<compile_context>
chip_gen: v7x
topology: tpu7x:2x2x1
jax: 0.10.0
libtpu: 0.0.40
codegen_flags: <defaults>
</compile_context>

<pallas_src>
import jax
import jax.numpy as jnp
from jax.experimental import pallas as pl
from jax.experimental.pallas import tpu as pltpu


_VMEM_LIMIT = 32 * 1024 * 1024   # modest explicit limit, safe on v5e/v6e/v7x


# ----------------------------------------------------------------------------
# Pallas kernels
# ----------------------------------------------------------------------------
def _conv_pool_kernel(x_ref, w_ref, b_ref, o_ref):
    """Fused valid conv (stride 1) + AvgPool2d(2) for one image.

    x_ref: (Mq, Kp) bf16 pooled box-sum im2col patches; rows = (hq, wq),
           cols = (kh, kw, cin) zero-padded to Kp (multiple of 128).
    w_ref: (Kp, 128) bf16 conv weight with the 1/4 pool factor folded in,
           zero-padded rows/cols.
    b_ref: (1, 128) f32 bias (zero-padded lanes).
    o_ref: (Mq, Cout) bf16 -- only the first Cout (< 128) lanes are stored,
           so the dead padded lanes never hit HBM.
    """
    acc = jnp.dot(x_ref[...], w_ref[...], preferred_element_type=jnp.float32)
    acc = acc + b_ref[...]
    o_ref[...] = acc[:, : o_ref.shape[-1]].astype(o_ref.dtype)


def _fc_fused_kernel(x_ref, w3_ref, b3_ref, w4_ref, b4_ref, w5_ref, b5_ref,
                     o_ref):
    """Linear(400->120)+ReLU -> Linear(120->84)+ReLU -> Linear(84->10).

    All weights VMEM-resident (< 0.2 MiB bf16 total); intermediates live in
    vregs.  Zero-padded weight rows/cols keep padded lanes exactly zero.
    """
    h = jnp.dot(x_ref[...], w3_ref[...],
                preferred_element_type=jnp.float32) + b3_ref[...]
    h = jnp.maximum(h, 0.0)
    h = jnp.dot(h.astype(jnp.bfloat16), w4_ref[...],
                preferred_element_type=jnp.float32) + b4_ref[...]
    h = jnp.maximum(h, 0.0)
    o_ref[...] = jnp.dot(h.astype(jnp.bfloat16), w5_ref[...],
                         preferred_element_type=jnp.float32) + b5_ref[...]


# ----------------------------------------------------------------------------
# pallas_call wrappers
# ----------------------------------------------------------------------------
def conv_pool(patches, wp, bp, out_ch):
    """patches: (N, Mq, Kp) bf16 -> (N, Mq, out_ch) bf16."""
    N, Mq, Kp = patches.shape
    Np = wp.shape[1]
    return pl.pallas_call(
        _conv_pool_kernel,
        out_shape=jax.ShapeDtypeStruct((N, Mq, out_ch), jnp.bfloat16),
        grid=(N,),
        in_specs=[
            # per-image patch tile; leading dim squeezed away in the kernel
            pl.BlockSpec((None, Mq, Kp), lambda i: (i, 0, 0)),
            # constant block index -> weights/bias stay VMEM-resident
            pl.BlockSpec((Kp, Np), lambda i: (0, 0)),
            pl.BlockSpec((1, Np), lambda i: (0, 0)),
        ],
        out_specs=pl.BlockSpec((None, Mq, out_ch), lambda i: (i, 0, 0)),
        compiler_params=pltpu.CompilerParams(
            dimension_semantics=("parallel",),        # v7x: both TensorCores
            vmem_limit_bytes=_VMEM_LIMIT),
    )(patches, wp, bp)


def fc_fused(x, w3p, b3p, w4p, b4p, w5p, b5p):
    M, K = x.shape
    Np = w3p.shape[1]
    return pl.pallas_call(
        _fc_fused_kernel,
        out_shape=jax.ShapeDtypeStruct((M, Np), jnp.float32),
        grid=(1,),
        in_specs=[
            pl.BlockSpec((M, K), lambda i: (0, 0)),
            pl.BlockSpec(w3p.shape, lambda i: (0, 0)),
            pl.BlockSpec(b3p.shape, lambda i: (0, 0)),
            pl.BlockSpec(w4p.shape, lambda i: (0, 0)),
            pl.BlockSpec(b4p.shape, lambda i: (0, 0)),
            pl.BlockSpec(w5p.shape, lambda i: (0, 0)),
            pl.BlockSpec(b5p.shape, lambda i: (0, 0)),
        ],
        out_specs=pl.BlockSpec((M, Np), lambda i: (0, 0)),
        compiler_params=pltpu.CompilerParams(
            dimension_semantics=("arbitrary",),
            vmem_limit_bytes=_VMEM_LIMIT),
    )(x, w3p, b3p, w4p, b4p, w5p, b5p)


# ----------------------------------------------------------------------------
# Glue: pooled im2col (one XLA fusion), one-time weight repacking, forward
# ----------------------------------------------------------------------------
def _pooled_patches(x, K, k_pad):
    """x: (N,H,W,C) -> (N, Hq*Wq, k_pad) bf16 pooled im2col patches.

    Column (kh,kw,c) at pooled row (hq,wq) holds the 2x2 pool-window SUM of
    the conv input x[n, 2*hq+kh + {0,1}, 2*wq+kw + {0,1}, c]; the 1/4 pool
    mean factor is folded into the prepared conv weights.
    NOTE: assumes even conv output height/width (true for 32x32 LeNet).
    """
    N, H, W, C = x.shape
    Hq, Wq = (H - K + 1) // 2, (W - K + 1) // 2
    xf = x.astype(jnp.float32)
    # 2x2 box sum (stride 1, valid): 3 adds on the full array.
    z = (xf[:, :-1, :-1, :] + xf[:, 1:, :-1, :]
         + xf[:, :-1, 1:, :] + xf[:, 1:, 1:, :])            # (N, H-1, W-1, C)
    cols = [z[:, kh:kh + 2 * Hq:2, kw:kw + 2 * Wq:2, :]     # (N, Hq, Wq, C)
            for kh in range(K) for kw in range(K)]
    p = jnp.stack(cols, axis=3).reshape(N, Hq * Wq, K * K * C)
    p = p.astype(jnp.bfloat16)
    return jnp.pad(p, ((0, 0), (0, 0), (0, k_pad - K * K * C)))


def init_params(key):
    """PyTorch-style uniform(-1/sqrt(fan_in), 1/sqrt(fan_in)) init, deterministic."""
    ks = jax.random.split(key, 10)

    def uni(k, shape, fan_in):
        bound = 1.0 / (fan_in ** 0.5)
        return jax.random.uniform(k, shape, jnp.float32, -bound, bound)

    return {
        "w1": uni(ks[0], (6, 3, 5, 5), 3 * 5 * 5),
        "b1": uni(ks[1], (6,), 3 * 5 * 5),
        "w2": uni(ks[2], (16, 6, 5, 5), 6 * 5 * 5),
        "b2": uni(ks[3], (16,), 6 * 5 * 5),
        "w3": uni(ks[4], (120, 400), 400),
        "b3": uni(ks[5], (120,), 400),
        "w4": uni(ks[6], (84, 120), 120),
        "b4": uni(ks[7], (84,), 120),
        "w5": uni(ks[8], (10, 84), 84),
        "b5": uni(ks[9], (10,), 84),
    }


def prepare_params(p):
    """One-time repack: bf16 weights, lane/K padding, 1/4 pool factor folded in."""
    bf16 = jnp.bfloat16
    # conv1: (cout,cin,kh,kw) -> rows (kh,kw,cin)=75 padded to 128, cols 6->128.
    w1 = p["w1"].transpose(2, 3, 1, 0).reshape(75, 6) * 0.25       # fold avgpool
    w1p = jnp.zeros((128, 128), bf16).at[:75, :6].set(w1.astype(bf16))
    b1p = jnp.zeros((1, 128), jnp.float32).at[0, :6].set(p["b1"])  # bias unscaled
    # conv2: a1 is stored with 8 channel lanes (6 real + 2 exact zeros), so
    # rows are (kh,kw,cin<8)=200 padded to 256, cols 16->128; 1/4 folded in.
    w2 = p["w2"].transpose(2, 3, 1, 0) * 0.25                      # (5,5,6,16)
    w2e = jnp.zeros((5, 5, 8, 16), jnp.float32).at[:, :, :6, :].set(w2)
    w2p = jnp.zeros((256, 128), bf16).at[:200, :16].set(
        w2e.reshape(200, 16).astype(bf16))
    b2p = jnp.zeros((1, 128), jnp.float32).at[0, :16].set(p["b2"])
    # fc1: PyTorch flatten order is (c,h,w); the conv2 kernel emits (h,w,c),
    # so permute w3 rows once -> (400, 120), cols padded to 128 (K stays 400).
    w3 = p["w3"].reshape(120, 16, 5, 5).transpose(2, 3, 1, 0).reshape(400, 120)
    w3p = jnp.zeros((400, 128), bf16).at[:, :120].set(w3.astype(bf16))
    b3p = jnp.zeros((1, 128), jnp.float32).at[0, :120].set(p["b3"])
    # fc2 / fc3: (out,in) -> (in,out), zero-padded to 128x128.
    w4p = jnp.zeros((128, 128), bf16).at[:120, :84].set(p["w4"].T.astype(bf16))
    b4p = jnp.zeros((1, 128), jnp.float32).at[0, :84].set(p["b4"])
    w5p = jnp.zeros((128, 128), bf16).at[:84, :10].set(p["w5"].T.astype(bf16))
    b5p = jnp.zeros((1, 128), jnp.float32).at[0, :10].set(p["b5"])
    return {"w1p": w1p, "b1p": b1p, "w2p": w2p, "b2p": b2p,
            "w3p": w3p, "b3p": b3p, "w4p": w4p, "b4p": b4p,
            "w5p": w5p, "b5p": b5p}


def lenet_forward(prepped, x):
    # x: (N, 3, 32, 32) NCHW (PyTorch API); convert once to NHWC internally.
    N = x.shape[0]
    x = jnp.transpose(x, (0, 2, 3, 1))                              # (N,32,32,3)

    # Conv1(3->6, k5) + AvgPool2 fused.
    p1 = _pooled_patches(x, 5, 128)                                 # (N,196,128) bf16
    a1 = conv_pool(p1, prepped["w1p"], prepped["b1p"], out_ch=8)    # (N,196,8) bf16
    a1 = a1.reshape(N, 14, 14, 8)                                   # lanes 6,7 == 0

    # Conv2(6->16, k5) + AvgPool2 fused (zero channel lanes carry zero weights).
    p2 = _pooled_patches(a1, 5, 256)                                # (N,25,256) bf16
    a2 = conv_pool(p2, prepped["w2p"], prepped["b2p"], out_ch=16)   # (N,25,16) bf16

    # Flatten in (h,w,c) order (w3 was permuted to match), fused FC stack.
    xf = a2.reshape(N, 400)
    logits = fc_fused(xf, prepped["w3p"], prepped["b3p"],
                      prepped["w4p"], prepped["b4p"],
                      prepped["w5p"], prepped["b5p"])               # (N,128) f32
    return logits[:, :10]


if __name__ == "__main__":
    key = jax.random.PRNGKey(0)
    pkey, xkey = jax.random.split(key)
    params = init_params(pkey)
    prepped = prepare_params(params)          # one-time weight repack/padding
    # LeNet's Flatten -> Linear(400) requires 32x32 spatial input.
    x = jax.random.normal(xkey, (2, 3, 32, 32), dtype=jnp.float32)

    fwd = jax.jit(lenet_forward)
    out = fwd(prepped, x)
    jax.block_until_ready(out)
    assert out.shape == (2, 10) and out.dtype == jnp.float32
    print("KERNEL_OK")
</pallas_src>

<mosaic_0001>
module attributes {stable_mosaic.version = 11 : i64} {
  func.func @_conv_pool_kernel(%arg0: i32, %arg1: memref<1x196x128xbf16, #tpu.memory_space<vmem>>, %arg2: memref<128x128xbf16, #tpu.memory_space<vmem>>, %arg3: memref<1x128xf32, #tpu.memory_space<vmem>>, %arg4: memref<1x196x8xbf16, #tpu.memory_space<vmem>>) attributes {dimension_semantics = [#tpu.dimension_semantics<parallel>], iteration_bounds = array<i64: 2>, scalar_prefetch = 0 : i64, scratch_operands = 0 : i64, tpu.core_type = #tpu.core_type<tc>, window_params = [{transform_indices = @transform_0, window_bounds = array<i64: 1, 196, 128>}, {pipeline_mode = #tpu.pipeline_mode<synchronous>, transform_indices = @transform_1, window_bounds = array<i64: 128, 128>}, {pipeline_mode = #tpu.pipeline_mode<synchronous>, transform_indices = @transform_2, window_bounds = array<i64: 1, 128>}, {transform_indices = @transform_3, window_bounds = array<i64: 1, 196, 8>}]} {
    %c0 = arith.constant 0 : index
    %c0_0 = arith.constant 0 : index
    %c0_1 = arith.constant 0 : index
    %0 = vector.load %arg1[%c0, %c0_0, %c0_1] : memref<1x196x128xbf16, #tpu.memory_space<vmem>>, vector<1x196x128xbf16>
    %1 = vector.shape_cast %0 : vector<1x196x128xbf16> to vector<196x128xbf16>
    %c0_2 = arith.constant 0 : index
    %c0_3 = arith.constant 0 : index
    %2 = vector.load %arg2[%c0_2, %c0_3] : memref<128x128xbf16, #tpu.memory_space<vmem>>, vector<128x128xbf16>
    %cst = arith.constant dense<0.000000e+00> : vector<196x128xf32>
    %3 = tpu.matmul %1, %2, %cst {dimension_numbers = #tpu.dot_dimension_numbers<[1], [0], [0], [1], [0, 0, 1, 1], [], []>} : vector<196x128xbf16>, vector<128x128xbf16>, vector<196x128xf32> -> vector<196x128xf32>
    %c0_4 = arith.constant 0 : index
    %c0_5 = arith.constant 0 : index
    %4 = vector.load %arg3[%c0_4, %c0_5] : memref<1x128xf32, #tpu.memory_space<vmem>>, vector<1x128xf32>
    %5 = vector.broadcast %4 : vector<1x128xf32> to vector<196x128xf32>
    %6 = arith.addf %3, %5 : vector<196x128xf32>
    %7 = vector.extract_strided_slice %6 {offsets = [0, 0], sizes = [196, 8], strides = [1, 1]} : vector<196x128xf32> to vector<196x8xf32>
    %8 = arith.truncf %7 : vector<196x8xf32> to vector<196x8xbf16>
    %c0_6 = arith.constant 0 : index
    %c0_7 = arith.constant 0 : index
    %c0_8 = arith.constant 0 : index
    %9 = vector.load %arg4[%c0_6, %c0_7, %c0_8] : memref<1x196x8xbf16, #tpu.memory_space<vmem>>, vector<1x196x8xbf16>
    %10 = vector.shape_cast %9 : vector<1x196x8xbf16> to vector<196x8xbf16>
    %11 = vector.shape_cast %8 : vector<196x8xbf16> to vector<1x196x8xbf16>
    tpu.vector_store %arg4[%c0_6, %c0_7, %c0_8], %11 {strides = array<i32>} : memref<1x196x8xbf16, #tpu.memory_space<vmem>>, vector<1x196x8xbf16>,
    return
  }
  func.func @transform_0(%arg0: i32) -> (i32, i32, i32) {
    %c0_i32 = arith.constant 0 : i32
    %c0_i32_0 = arith.constant 0 : i32
    %c0_i32_1 = arith.constant 0 : i32
    return %arg0, %c0_i32, %c0_i32_0 : i32, i32, i32
  }
  func.func @transform_1(%arg0: i32) -> (i32, i32) {
    %c0_i32 = arith.constant 0 : i32
    %c0_i32_0 = arith.constant 0 : i32
    %c0_i32_1 = arith.constant 0 : i32
    return %c0_i32, %c0_i32_0 : i32, i32
  }
  func.func @transform_2(%arg0: i32) -> (i32, i32) {
    %c0_i32 = arith.constant 0 : i32
    %c0_i32_0 = arith.constant 0 : i32
    %c0_i32_1 = arith.constant 0 : i32
    return %c0_i32, %c0_i32_0 : i32, i32
  }
  func.func @transform_3(%arg0: i32) -> (i32, i32, i32) {
    %c0_i32 = arith.constant 0 : i32
    %c0_i32_0 = arith.constant 0 : i32
    %c0_i32_1 = arith.constant 0 : i32
    return %arg0, %c0_i32, %c0_i32_0 : i32, i32, i32
  }
}

module attributes {stable_mosaic.version = 11 : i64} {
  func.func @_conv_pool_kernel(%arg0: i32, %arg1: memref<1x25x256xbf16, #tpu.memory_space<vmem>>, %arg2: memref<256x128xbf16, #tpu.memory_space<vmem>>, %arg3: memref<1x128xf32, #tpu.memory_space<vmem>>, %arg4: memref<1x25x16xbf16, #tpu.memory_space<vmem>>) attributes {dimension_semantics = [#tpu.dimension_semantics<parallel>], iteration_bounds = array<i64: 2>, scalar_prefetch = 0 : i64, scratch_operands = 0 : i64, tpu.core_type = #tpu.core_type<tc>, window_params = [{transform_indices = @transform_0, window_bounds = array<i64: 1, 25, 256>}, {pipeline_mode = #tpu.pipeline_mode<synchronous>, transform_indices = @transform_1, window_bounds = array<i64: 256, 128>}, {pipeline_mode = #tpu.pipeline_mode<synchronous>, transform_indices = @transform_2, window_bounds = array<i64: 1, 128>}, {transform_indices = @transform_3, window_bounds = array<i64: 1, 25, 16>}]} {
    %c0 = arith.constant 0 : index
    %c0_0 = arith.constant 0 : index
    %c0_1 = arith.constant 0 : index
    %0 = vector.load %arg1[%c0, %c0_0, %c0_1] : memref<1x25x256xbf16, #tpu.memory_space<vmem>>, vector<1x25x256xbf16>
    %1 = vector.shape_cast %0 : vector<1x25x256xbf16> to vector<25x256xbf16>
    %c0_2 = arith.constant 0 : index
    %c0_3 = arith.constant 0 : index
    %2 = vector.load %arg2[%c0_2, %c0_3] : memref<256x128xbf16, #tpu.memory_space<vmem>>, vector<256x128xbf16>
    %cst = arith.constant dense<0.000000e+00> : vector<25x128xf32>
    %3 = tpu.matmul %1, %2, %cst {dimension_numbers = #tpu.dot_dimension_numbers<[1], [0], [0], [1], [0, 0, 1, 1], [], []>} : vector<25x256xbf16>, vector<256x128xbf16>, vector<25x128xf32> -> vector<25x128xf32>
    %c0_4 = arith.constant 0 : index
    %c0_5 = arith.constant 0 : index
    %4 = vector.load %arg3[%c0_4, %c0_5] : memref<1x128xf32, #tpu.memory_space<vmem>>, vector<1x128xf32>
    %5 = vector.broadcast %4 : vector<1x128xf32> to vector<25x128xf32>
    %6 = arith.addf %3, %5 : vector<25x128xf32>
    %7 = vector.extract_strided_slice %6 {offsets = [0, 0], sizes = [25, 16], strides = [1, 1]} : vector<25x128xf32> to vector<25x16xf32>
    %8 = arith.truncf %7 : vector<25x16xf32> to vector<25x16xbf16>
    %c0_6 = arith.constant 0 : index
    %c0_7 = arith.constant 0 : index
    %c0_8 = arith.constant 0 : index
    %9 = vector.load %arg4[%c0_6, %c0_7, %c0_8] : memref<1x25x16xbf16, #tpu.memory_space<vmem>>, vector<1x25x16xbf16>
    %10 = vector.shape_cast %9 : vector<1x25x16xbf16> to vector<25x16xbf16>
    %11 = vector.shape_cast %8 : vector<25x16xbf16> to vector<1x25x16xbf16>
    tpu.vector_store %arg4[%c0_6, %c0_7, %c0_8], %11 {strides = array<i32>} : memref<1x25x16xbf16, #tpu.memory_space<vmem>>, vector<1x25x16xbf16>,
    return
  }
  func.func @transform_0(%arg0: i32) -> (i32, i32, i32) {
    %c0_i32 = arith.constant 0 : i32
    %c0_i32_0 = arith.constant 0 : i32
    %c0_i32_1 = arith.constant 0 : i32
    return %arg0, %c0_i32, %c0_i32_0 : i32, i32, i32
  }
  func.func @transform_1(%arg0: i32) -> (i32, i32) {
    %c0_i32 = arith.constant 0 : i32
    %c0_i32_0 = arith.constant 0 : i32
    %c0_i32_1 = arith.constant 0 : i32
    return %c0_i32, %c0_i32_0 : i32, i32
  }
  func.func @transform_2(%arg0: i32) -> (i32, i32) {
    %c0_i32 = arith.constant 0 : i32
    %c0_i32_0 = arith.constant 0 : i32
    %c0_i32_1 = arith.constant 0 : i32
    return %c0_i32, %c0_i32_0 : i32, i32
  }
  func.func @transform_3(%arg0: i32) -> (i32, i32, i32) {
    %c0_i32 = arith.constant 0 : i32
    %c0_i32_0 = arith.constant 0 : i32
    %c0_i32_1 = arith.constant 0 : i32
    return %arg0, %c0_i32, %c0_i32_0 : i32, i32, i32
  }
}

module attributes {stable_mosaic.version = 11 : i64} {
  func.func @_fc_fused_kernel(%arg0: i32, %arg1: memref<2x400xbf16, #tpu.memory_space<vmem>>, %arg2: memref<400x128xbf16, #tpu.memory_space<vmem>>, %arg3: memref<1x128xf32, #tpu.memory_space<vmem>>, %arg4: memref<128x128xbf16, #tpu.memory_space<vmem>>, %arg5: memref<1x128xf32, #tpu.memory_space<vmem>>, %arg6: memref<128x128xbf16, #tpu.memory_space<vmem>>, %arg7: memref<1x128xf32, #tpu.memory_space<vmem>>, %arg8: memref<2x128xf32, #tpu.memory_space<vmem>>) attributes {dimension_semantics = [#tpu.dimension_semantics<arbitrary>], iteration_bounds = array<i64: 1>, scalar_prefetch = 0 : i64, scratch_operands = 0 : i64, tpu.core_type = #tpu.core_type<tc>, window_params = [{pipeline_mode = #tpu.pipeline_mode<synchronous>, transform_indices = @transform_0, window_bounds = array<i64: 2, 400>}, {pipeline_mode = #tpu.pipeline_mode<synchronous>, transform_indices = @transform_1, window_bounds = array<i64: 400, 128>}, {pipeline_mode = #tpu.pipeline_mode<synchronous>, transform_indices = @transform_2, window_bounds = array<i64: 1, 128>}, {pipeline_mode = #tpu.pipeline_mode<synchronous>, transform_indices = @transform_3, window_bounds = array<i64: 128, 128>}, {pipeline_mode = #tpu.pipeline_mode<synchronous>, transform_indices = @transform_4, window_bounds = array<i64: 1, 128>}, {pipeline_mode = #tpu.pipeline_mode<synchronous>, transform_indices = @transform_5, window_bounds = array<i64: 128, 128>}, {pipeline_mode = #tpu.pipeline_mode<synchronous>, transform_indices = @transform_6, window_bounds = array<i64: 1, 128>}, {pipeline_mode = #tpu.pipeline_mode<synchronous>, transform_indices = @transform_7, window_bounds = array<i64: 2, 128>}]} {
    %c0 = arith.constant 0 : index
    %c0_0 = arith.constant 0 : index
    %0 = vector.load %arg1[%c0, %c0_0] : memref<2x400xbf16, #tpu.memory_space<vmem>>, vector<2x400xbf16>
    %c0_1 = arith.constant 0 : index
    %c0_2 = arith.constant 0 : index
    %1 = vector.load %arg2[%c0_1, %c0_2] : memref<400x128xbf16, #tpu.memory_space<vmem>>, vector<400x128xbf16>
    %cst = arith.constant dense<0.000000e+00> : vector<2x128xf32>
    %2 = tpu.matmul %0, %1, %cst {dimension_numbers = #tpu.dot_dimension_numbers<[1], [0], [0], [1], [0, 0, 1, 1], [], []>} : vector<2x400xbf16>, vector<400x128xbf16>, vector<2x128xf32> -> vector<2x128xf32>
    %c0_3 = arith.constant 0 : index
    %c0_4 = arith.constant 0 : index
    %3 = vector.load %arg3[%c0_3, %c0_4] : memref<1x128xf32, #tpu.memory_space<vmem>>, vector<1x128xf32>
    %4 = vector.broadcast %3 : vector<1x128xf32> to vector<2x128xf32>
    %5 = arith.addf %2, %4 : vector<2x128xf32>
    %cst_5 = arith.constant 0.000000e+00 : f32
    %6 = vector.broadcast %cst_5 : f32 to vector<2x128xf32>
    %7 = arith.maximumf %5, %6 : vector<2x128xf32>
    %8 = arith.truncf %7 : vector<2x128xf32> to vector<2x128xbf16>
    %c0_6 = arith.constant 0 : index
    %c0_7 = arith.constant 0 : index
    %9 = vector.load %arg4[%c0_6, %c0_7] : memref<128x128xbf16, #tpu.memory_space<vmem>>, vector<128x128xbf16>
    %cst_8 = arith.constant dense<0.000000e+00> : vector<2x128xf32>
    %10 = tpu.matmul %8, %9, %cst_8 {dimension_numbers = #tpu.dot_dimension_numbers<[1], [0], [0], [1], [0, 0, 1, 1], [], []>} : vector<2x128xbf16>, vector<128x128xbf16>, vector<2x128xf32> -> vector<2x128xf32>
    %c0_9 = arith.constant 0 : index
    %c0_10 = arith.constant 0 : index
    %11 = vector.load %arg5[%c0_9, %c0_10] : memref<1x128xf32, #tpu.memory_space<vmem>>, vector<1x128xf32>
    %12 = vector.broadcast %11 : vector<1x128xf32> to vector<2x128xf32>
    %13 = arith.addf %10, %12 : vector<2x128xf32>
    %cst_11 = arith.constant 0.000000e+00 : f32
    %14 = vector.broadcast %cst_11 : f32 to vector<2x128xf32>
    %15 = arith.maximumf %13, %14 : vector<2x128xf32>
    %16 = arith.truncf %15 : vector<2x128xf32> to vector<2x128xbf16>
    %c0_12 = arith.constant 0 : index
    %c0_13 = arith.constant 0 : index
    %17 = vector.load %arg6[%c0_12, %c0_13] : memref<128x128xbf16, #tpu.memory_space<vmem>>, vector<128x128xbf16>
    %cst_14 = arith.constant dense<0.000000e+00> : vector<2x128xf32>
    %18 = tpu.matmul %16, %17, %cst_14 {dimension_numbers = #tpu.dot_dimension_numbers<[1], [0], [0], [1], [0, 0, 1, 1], [], []>} : vector<2x128xbf16>, vector<128x128xbf16>, vector<2x128xf32> -> vector<2x128xf32>
    %c0_15 = arith.constant 0 : index
    %c0_16 = arith.constant 0 : index
    %19 = vector.load %arg7[%c0_15, %c0_16] : memref<1x128xf32, #tpu.memory_space<vmem>>, vector<1x128xf32>
    %20 = vector.broadcast %19 : vector<1x128xf32> to vector<2x128xf32>
    %21 = arith.addf %18, %20 : vector<2x128xf32>
    %c0_17 = arith.constant 0 : index
    %c0_18 = arith.constant 0 : index
    %22 = vector.load %arg8[%c0_17, %c0_18] : memref<2x128xf32, #tpu.memory_space<vmem>>, vector<2x128xf32>
    tpu.vector_store %arg8[%c0_17, %c0_18], %21 {strides = array<i32>} : memref<2x128xf32, #tpu.memory_space<vmem>>, vector<2x128xf32>,
    return
  }
  func.func @transform_0(%arg0: i32) -> (i32, i32) {
    %c0_i32 = arith.constant 0 : i32
    %c0_i32_0 = arith.constant 0 : i32
    %c0_i32_1 = arith.constant 0 : i32
    return %c0_i32, %c0_i32_0 : i32, i32
  }
  func.func @transform_1(%arg0: i32) -> (i32, i32) {
    %c0_i32 = arith.constant 0 : i32
    %c0_i32_0 = arith.constant 0 : i32
    %c0_i32_1 = arith.constant 0 : i32
    return %c0_i32, %c0_i32_0 : i32, i32
  }
  func.func @transform_2(%arg0: i32) -> (i32, i32) {
    %c0_i32 = arith.constant 0 : i32
    %c0_i32_0 = arith.constant 0 : i32
    %c0_i32_1 = arith.constant 0 : i32
    return %c0_i32, %c0_i32_0 : i32, i32
  }
  func.func @transform_3(%arg0: i32) -> (i32, i32) {
    %c0_i32 = arith.constant 0 : i32
    %c0_i32_0 = arith.constant 0 : i32
    %c0_i32_1 = arith.constant 0 : i32
    return %c0_i32, %c0_i32_0 : i32, i32
  }
  func.func @transform_4(%arg0: i32) -> (i32, i32) {
    %c0_i32 = arith.constant 0 : i32
    %c0_i32_0 = arith.constant 0 : i32
    %c0_i32_1 = arith.constant 0 : i32
    return %c0_i32, %c0_i32_0 : i32, i32
  }
  func.func @transform_5(%arg0: i32) -> (i32, i32) {
    %c0_i32 = arith.constant 0 : i32
    %c0_i32_0 = arith.constant 0 : i32
    %c0_i32_1 = arith.constant 0 : i32
    return %c0_i32, %c0_i32_0 : i32, i32
  }
  func.func @transform_6(%arg0: i32) -> (i32, i32) {
    %c0_i32 = arith.constant 0 : i32
    %c0_i32_0 = arith.constant 0 : i32
    %c0_i32_1 = arith.constant 0 : i32
    return %c0_i32, %c0_i32_0 : i32, i32
  }
  func.func @transform_7(%arg0: i32) -> (i32, i32) {
    %c0_i32 = arith.constant 0 : i32
    %c0_i32_0 = arith.constant 0 : i32
    %c0_i32_1 = arith.constant 0 : i32
    return %c0_i32, %c0_i32_0 : i32, i32
  }
}

</mosaic_0001>

<llo_original>
// kernel: lenet_forward.3
$region0: #{lenet_forward.3}
  #allocation0 [shape = 'u32[]', space=smem, size = 0x4, offset = 0x4, fixed_abs, tag = 'smem constant byte address 0x4 - core index']
  #allocation1 [shape = 'u32[144,128]{1,0:T(1,128)}', space=vmem, size = 0x12000, scoped, tag = 'internal scratch']
  %s0 = inlined_call_operand.vmem [shape: bf16[2,196,128], index: 0, kind: input, shape index: {}]
  %s1 = inlined_call_operand.vmem [shape: bf16[128,128], index: 1, kind: input, shape index: {}]
  %s2 = inlined_call_operand.vmem [shape: f32[1,128], index: 2, kind: input, shape index: {}]
  %s3 = inlined_call_operand.vmem [shape: bf16[2,196,8], index: 3, kind: output, shape index: {}]
  %s4 = sld [smem:[#allocation0]]
  $region45: #{lenet_forward.3} parent=0
    _
  %s6 = ssub.s32 1, %s4
  %s7 = scalar_select 0, %s6, %s4
  loop: start=0, step=1, limit=4
  $region2: #{lenet_forward.3} parent=0 // loop_pre_header
    _
  $region3: #{lenet_forward.3} parent=0 // loop_header
    %s9 = sphi 0, %s13
    %p10 = scmp.ge.s32.totalorder %s9, 4
    %s19 = sphi 0, %s21
    %s22 = sphi 0, %s19
    %s23 = sphi 0, %s22
    %s39 = sphi 0, %s23
    %s43 = sphi 0, %s43
    %s45 = sphi 0, %s43
    %s46 = sphi 0, %s45
    %s60 = sphi 0, %s46
    %s64 = sphi 0, %s64
    %s66 = sphi 0, %s64
    %s67 = sphi 0, %s66
    %s81 = sphi 0, %s67
    %s87 = sphi 0, %s89
    %s90 = sphi 0, %s87
    %s91 = sphi 0, %s90
    %s107 = sphi 0, %s91
  $region4: #{lenet_forward.3} parent=0 // loop_header_branch
    %12 = sbr.rel (%p10) target = $region8
  $region5: #{lenet_forward.3} parent=0 // loop_body
    %s14 = ssub.s32 %s9, 1
    %s15 = ssub.s32 %s9, 2
    %s16 = sadd.s32 %s9, 1
    %s17 = ssub.s32 %s9, %s16
    %p18 = scmp.eq.s32.totalorder %s17, 0
    %s20 = sadd.s32 %s19, 1
    %s21 = scalar_select %p18, %s19, %s20
    %p24 = pneg %p18
    %p25 = scmp.eq.s32.totalorder %s9, 1
    %p26 = por %p24, %p25
    %p27 = scmp.ne.s32.totalorder %s19, %s22
    %p28 = scmp.eq.s32.totalorder %s9, 0
    %p29 = por %p27, %p28
    %p30 = scmp.ne.s32.totalorder %s19, %s22
    %p31 = scmp.eq.s32.totalorder %s14, 1
    %p32 = por %p30, %p31
    %p33 = scmp.ne.s32.totalorder %s22, %s23
    %p34 = scmp.eq.s32.totalorder %s14, 0
    %p35 = por %p33, %p34
    %p36 = scmp.ne.s32.totalorder %s22, %s23
    %p37 = scmp.eq.s32.totalorder %s15, 1
    %p38 = por %p36, %p37
    %p40 = scmp.ne.s32.totalorder %s23, %s39
    %p41 = scmp.eq.s32.totalorder %s15, 0
    %p42 = por %p40, %p41
    %s44 = sadd.s32 %s43, 1
    %p47 = scmp.eq.s32.totalorder %s9, 1
    %p48 = scmp.ne.s32.totalorder %s43, %s45
    %p49 = scmp.eq.s32.totalorder %s9, 0
    %p50 = por %p48, %p49
    %p51 = scmp.ne.s32.totalorder %s43, %s45
    %p52 = scmp.eq.s32.totalorder %s14, 1
    %p53 = por %p51, %p52
    %p54 = scmp.ne.s32.totalorder %s45, %s46
    %p55 = scmp.eq.s32.totalorder %s14, 0
    %p56 = por %p54, %p55
    %p57 = scmp.ne.s32.totalorder %s45, %s46
    %p58 = scmp.eq.s32.totalorder %s15, 1
    %p59 = por %p57, %p58
    %p61 = scmp.ne.s32.totalorder %s46, %s60
    %p62 = scmp.eq.s32.totalorder %s15, 0
    %p63 = por %p61, %p62
    %s65 = sadd.s32 %s64, 1
    %p68 = scmp.eq.s32.totalorder %s9, 1
    %p69 = scmp.ne.s32.totalorder %s64, %s66
    %p70 = scmp.eq.s32.totalorder %s9, 0
    %p71 = por %p69, %p70
    %p72 = scmp.ne.s32.totalorder %s64, %s66
    %p73 = scmp.eq.s32.totalorder %s14, 1
    %p74 = por %p72, %p73
    %p75 = scmp.ne.s32.totalorder %s66, %s67
    %p76 = scmp.eq.s32.totalorder %s14, 0
    %p77 = por %p75, %p76
    %p78 = scmp.ne.s32.totalorder %s66, %s67
    %p79 = scmp.eq.s32.totalorder %s15, 1
    %p80 = por %p78, %p79
    %p82 = scmp.ne.s32.totalorder %s67, %s81
    %p83 = scmp.eq.s32.totalorder %s15, 0
    %p84 = por %p82, %p83
    %s85 = ssub.s32 %s9, %s16
    %p86 = scmp.eq.s32.totalorder %s85, 0
    %s88 = sadd.s32 %s87, 1
    %s89 = scalar_select %p86, %s87, %s88
    %p92 = pneg %p86
    %p93 = scmp.eq.s32.totalorder %s9, 1
    %p94 = por %p92, %p93
    %p95 = scmp.ne.s32.totalorder %s87, %s90
    %p96 = scmp.eq.s32.totalorder %s9, 0
    %p97 = por %p95, %p96
    %p98 = scmp.ne.s32.totalorder %s87, %s90
    %p99 = scmp.eq.s32.totalorder %s14, 1
    %p100 = por %p98, %p99
    %p101 = scmp.ne.s32.totalorder %s90, %s91
    %p102 = scmp.eq.s32.totalorder %s14, 0
    %p103 = por %p101, %p102
    %p104 = scmp.ne.s32.totalorder %s90, %s91
    %p105 = scmp.eq.s32.totalorder %s15, 1
    %p106 = por %p104, %p105
    %p108 = scmp.ne.s32.totalorder %s91, %s107
    %p109 = scmp.eq.s32.totalorder %s15, 0
    %p110 = por %p108, %p109
    %p111 = scmp.le.s32.totalorder 1, %s9
    %p112 = scmp.lt.s32.totalorder %s9, 3
    %p113 = pnand %p111, %p112
    %p114 = pneg %p113
    // Predicated region
    $region9: #{lenet_forward.3} parent=5 // pred_check
      _
    $region10: #{lenet_forward.3} parent=5 // pred_check_branch
      %116 = sbr.rel (%p113) target = $region12
    $region11: #{lenet_forward.3} parent=5 // pred_region
      %s117 = ssub.s32 %s9, 1
      // Predicated region
      $region13: #{lenet_forward.3} parent=11 // pred_check
        %p118 = pneg %p56
      $region14: #{lenet_forward.3} parent=11 // pred_check_branch
        %120 = sbr.rel (%p118) target = $region16
      $region15: #{lenet_forward.3} parent=11 // pred_region
        _
      $region16: #{lenet_forward.3} parent=11 // pred_fallthru
        _
      // Predicated region
      $region17: #{lenet_forward.3} parent=11 // pred_check
        %p121 = pneg %p77
      $region18: #{lenet_forward.3} parent=11 // pred_check_branch
        %123 = sbr.rel (%p121) target = $region20
      $region19: #{lenet_forward.3} parent=11 // pred_region
        _
      $region20: #{lenet_forward.3} parent=11 // pred_fallthru
        _
    $region12: #{lenet_forward.3} parent=5 // pred_fallthru
      _
    %p124 = scmp.lt.s32.totalorder %s9, 2
    // Predicated region
    $region21: #{lenet_forward.3} parent=5 // pred_check
      %p125 = pneg %p124
    $region22: #{lenet_forward.3} parent=5 // pred_check_branch
      %127 = sbr.rel (%p125) target = $region24
    $region23: #{lenet_forward.3} parent=5 // pred_region
      // Predicated region
      $region25: #{lenet_forward.3} parent=23 // pred_check
        %p128 = pneg %p29
      $region26: #{lenet_forward.3} parent=23 // pred_check_branch
        %130 = sbr.rel (%p128) target = $region28
      $region27: #{lenet_forward.3} parent=23 // pred_region
        %p131 = scmp.lt.s32.totalorder %s9, 1
        %s132 = scalar_select %p131, %s9, 1
        %s133 = smul.addr %s132, 25
        %s134 = smul.addr %s133, 4
        %s135 = scalar_lea.vmem %s0, %s134
      $region28: #{lenet_forward.3} parent=23 // pred_fallthru
        _
    $region24: #{lenet_forward.3} parent=5 // pred_fallthru
      _
    %p136 = scmp.le.s32.totalorder 1, %s9
    %p137 = scmp.lt.s32.totalorder %s9, 3
    %p138 = pnand %p136, %p137
    %p139 = pneg %p138
    // Predicated region
    $region29: #{lenet_forward.3} parent=5 // pred_check
      _
    $region30: #{lenet_forward.3} parent=5 // pred_check_branch
      %141 = sbr.rel (%p138) target = $region32
    $region31: #{lenet_forward.3} parent=5 // pred_region
      %s142 = ssub.s32 %s9, 1
      %p143 = scmp.lt.s32.totalorder %s14, 1
      %s144 = scalar_select %p143, %s14, 1
      %s145 = smul.addr %s144, 25
      %s146 = smul.addr %s145, 4
      %s147 = scalar_lea.vmem %s0, %s146
      %p148 = pneg %p35
      %p149 = pneg %p32
      %p150 = pneg %p56
      %p151 = pneg %p53
      %p152 = pneg %p77
      %p153 = pneg %p74
      %p154 = pneg %p103
      %p155 = pneg %p100
      %p156 = scmp.lt.s32.totalorder %s14, 1
      %s157 = scalar_select %p156, %s14, 1
      %s158 = smul.addr %s157, 25
      %s159 = smul.addr %s158, 4
      %s160 = scalar_lea.vmem %s3, %s159
      %p161 = scmp.lt.s32.totalorder %s14, 1
      %s162 = scalar_select %p161, %s14, 1
      %s163 = smul.addr %s162, 25
      %s164 = smul.addr %s163, 4
      %s165 = scalar_lea.vmem %s0, %s164
      %p166 = scmp.lt.s32.totalorder %s14, 1
      %s167 = scalar_select %p166, %s14, 1
      %s168 = smul.addr %s167, 25
      %s169 = smul.addr %s168, 4
      %s170 = scalar_lea.vmem %s3, %s169
      %v172 = vld [vmem:[%s165] sm:$0xf]
      %v173 = vld [vmem:[%s165 + $0x4] sm:$0xf]
      %v174 = vld [vmem:[%s165 + $0x8] sm:$0xf]
      %v175 = vld [vmem:[%s165 + $0xc] sm:$0xf]
      %v176 = vld [vmem:[%s165 + $0x10] sm:$0xf]
      %v177 = vld [vmem:[%s165 + $0x14] sm:$0xf]
      %v178 = vld [vmem:[%s165 + $0x18] sm:$0xf]
      %v179 = vld [vmem:[%s165 + $0x1c] sm:$0xf]
      %v180 = vld [vmem:[%s165 + $0x20] sm:$0xf]
      %v181 = vld [vmem:[%s165 + $0x24] sm:$0xf]
      %v182 = vld [vmem:[%s165 + $0x28] sm:$0xf]
      %v183 = vld [vmem:[%s165 + $0x2c] sm:$0xf]
      %v184 = vld [vmem:[%s165 + $0x30] sm:$0xf]
      %v185 = vld [vmem:[%s165 + $0x34] sm:$0xf]
      %v186 = vld [vmem:[%s165 + $0x38] sm:$0xf]
      %v187 = vld [vmem:[%s165 + $0x3c] sm:$0xf]
      %v188 = vld [vmem:[%s165 + $0x40] sm:$0xf]
      %v189 = vld [vmem:[%s165 + $0x44] sm:$0xf]
      %v190 = vld [vmem:[%s165 + $0x48] sm:$0xf]
      %v191 = vld [vmem:[%s165 + $0x4c] sm:$0xf]
      %v192 = vld [vmem:[%s165 + $0x50] sm:$0xf]
      %v193 = vld [vmem:[%s165 + $0x54] sm:$0xf]
      %v194 = vld [vmem:[%s165 + $0x58] sm:$0xf]
      %v195 = vld [vmem:[%s165 + $0x5c] sm:$0xf]
      %v196 = vld [vmem:[%s165 + $0x60] sm:$0x3]
      %v197 = vld [vmem:[%s1] sm:$0xf]
      %v198 = vld [vmem:[%s1 + $0x4] sm:$0xf]
      %v199 = vld [vmem:[%s1 + $0x8] sm:$0xf]
      %v200 = vld [vmem:[%s1 + $0xc] sm:$0xf]
      %v201 = vld [vmem:[%s1 + $0x10] sm:$0xf]
      %v202 = vld [vmem:[%s1 + $0x14] sm:$0xf]
      %v203 = vld [vmem:[%s1 + $0x18] sm:$0xf]
      %v204 = vld [vmem:[%s1 + $0x1c] sm:$0xf]
      %v205 = vld [vmem:[%s1 + $0x20] sm:$0xf]
      %v206 = vld [vmem:[%s1 + $0x24] sm:$0xf]
      %v207 = vld [vmem:[%s1 + $0x28] sm:$0xf]
      %v208 = vld [vmem:[%s1 + $0x2c] sm:$0xf]
      %v209 = vld [vmem:[%s1 + $0x30] sm:$0xf]
      %v210 = vld [vmem:[%s1 + $0x34] sm:$0xf]
      %v211 = vld [vmem:[%s1 + $0x38] sm:$0xf]
      %v212 = vld [vmem:[%s1 + $0x3c] sm:$0xf]
      %v213 = vld [vmem:[%s2] sm:$0x1]
      %v215 = vlaneseq
      %v216 = vshrl.u32 %v215, 7
      %v217 = vsub.s32 0, %v216
      %v218 = vrot.slane %v213, %v217
      %v245 = vunpack.c.l.b16 %v172
      %v246 = vunpack.c.l.b16 %v173
      %v247 = vunpack.c.l.b16 %v174
      %v248 = vunpack.c.l.b16 %v175
      %v249 = vunpack.c.l.b16 %v176
      %v250 = vunpack.c.l.b16 %v177
      %v251 = vunpack.c.l.b16 %v178
      %v252 = vunpack.c.l.b16 %v179
      %v253 = vunpack.c.l.b16 %v180
      %v254 = vunpack.c.l.b16 %v181
      %v255 = vunpack.c.l.b16 %v182
      %v256 = vunpack.c.l.b16 %v183
      %v257 = vunpack.c.l.b16 %v184
      %v258 = vunpack.c.l.b16 %v185
      %v259 = vunpack.c.l.b16 %v186
      %v260 = vunpack.c.l.b16 %v187
      %v261 = vunpack.c.l.b16 %v188
      %v262 = vunpack.c.l.b16 %v189
      %v263 = vunpack.c.l.b16 %v190
      %v264 = vunpack.c.l.b16 %v191
      %v265 = vunpack.c.l.b16 %v192
      %v266 = vunpack.c.l.b16 %v193
      %v267 = vunpack.c.l.b16 %v194
      %v268 = vunpack.c.l.b16 %v195
      %v269 = vunpack.c.l.b16 %v196
      %v270 = vpack.c.b16 %v246, %v245
      %v271 = vpack.c.b16 %v248, %v247
      %v272 = vpack.c.b16 %v250, %v249
      %v273 = vpack.c.b16 %v252, %v251
      %v274 = vpack.c.b16 %v254, %v253
      %v275 = vpack.c.b16 %v256, %v255
      %v276 = vpack.c.b16 %v258, %v257
      %v277 = vpack.c.b16 %v260, %v259
      %v278 = vpack.c.b16 %v262, %v261
      %v279 = vpack.c.b16 %v264, %v263
      %v280 = vpack.c.b16 %v266, %v265
      %v281 = vpack.c.b16 %v268, %v267
      %v282 = vpack.c.b16 %v269, %v269
      %v312 = vunpack.c.l.b16 %v197
      %v313 = vunpack.c.l.b16 %v198
      %v314 = vunpack.c.l.b16 %v199
      %v315 = vunpack.c.l.b16 %v200
      %v316 = vunpack.c.l.b16 %v201
      %v317 = vunpack.c.l.b16 %v202
      %v318 = vunpack.c.l.b16 %v203
      %v319 = vunpack.c.l.b16 %v204
      %v320 = vunpack.c.l.b16 %v205
      %v321 = vunpack.c.l.b16 %v206
      %v322 = vunpack.c.l.b16 %v207
      %v323 = vunpack.c.l.b16 %v208
      %v324 = vunpack.c.l.b16 %v209
      %v325 = vunpack.c.l.b16 %v210
      %v326 = vunpack.c.l.b16 %v211
      %v327 = vunpack.c.l.b16 %v212
      %v328 = vpack.c.b16 %v313, %v312
      %v329 = vpack.c.b16 %v315, %v314
      %v330 = vpack.c.b16 %v317, %v316
      %v331 = vpack.c.b16 %v319, %v318
      %v332 = vpack.c.b16 %v321, %v320
      %v333 = vpack.c.b16 %v323, %v322
      %v334 = vpack.c.b16 %v325, %v324
      %v335 = vpack.c.b16 %v327, %v326
      %344 = vmatprep.subr.bf16.mxu0 0
      %345 = vmatpush1.bf16.msra.mxu0 %v328
      %346 = vmatprep.subr.bf16.mxu0 0
      %347 = vmatpush1.bf16.msra.mxu0 %v329
      %348 = vmatprep.subr.bf16.mxu0 0
      %349 = vmatpush1.bf16.msra.mxu0 %v330
      %350 = vmatprep.subr.bf16.mxu0 0
      %351 = vmatpush1.bf16.msra.mxu0 %v331
      %352 = vmatprep.subr.bf16.mxu0 0
      %353 = vmatpush1.bf16.msra.mxu0 %v332
      %354 = vmatprep.subr.bf16.mxu0 0
      %355 = vmatpush1.bf16.msra.mxu0 %v333
      %356 = vmatprep.subr.bf16.mxu0 0
      %357 = vmatpush1.bf16.msra.mxu0 %v334
      %358 = vmatprep.subr.bf16.mxu0 0
      %359 = vmatpush1.bf16.msra.mxu0 %v335
      %360 = vmatprep.subr.bf16.mxu0 0
      %361 = vmatpush1.bf16.msra.mxu0 0
      %362 = vmatprep.subr.bf16.mxu0 0
      %363 = vmatpush1.bf16.msra.mxu0 0
      %364 = vmatprep.subr.bf16.mxu0 0
      %365 = vmatpush1.bf16.msra.mxu0 0
      %366 = vmatprep.subr.bf16.mxu0 0
      %367 = vmatpush1.bf16.msra.mxu0 0
      %368 = vmatprep.subr.bf16.mxu0 0
      %369 = vmatpush1.bf16.msra.mxu0 0
      %370 = vmatprep.subr.bf16.mxu0 0
      %371 = vmatpush1.bf16.msra.mxu0 0
      %372 = vmatprep.subr.bf16.mxu0 0
      %373 = vmatpush1.bf16.msra.mxu0 0
      %374 = vmatprep.subr.bf16.mxu0 0
      %375 = vmatpush1.bf16.msra.mxu0 0
      %376 = vmatprep.mubr.bf16.mxu0 0
      %377 = vmatmul.mubr.bf16.gmra.mrb[0].mxu0 %v270
      %v378 = vpop.f32.mrb[0].mxu0
      %v379 = vadd.f32 %v218, %v378
      %v380 = vpop.f32.mrb[0].mxu0
      %v381 = vpop.f32.mrb[0].mxu0
      %v382 = vadd.f32 %v218, %v381
      %v383 = vpop.f32.mrb[0].mxu0
      %384 = vmatprep.mubr.bf16.mxu0 0
      %385 = vmatmul.mubr.bf16.gmra.mrb[0].mxu0 %v271
      %v386 = vpop.f32.mrb[0].mxu0
      %v387 = vadd.f32 %v218, %v386
      %v388 = vpop.f32.mrb[0].mxu0
      %v389 = vpop.f32.mrb[0].mxu0
      %v390 = vadd.f32 %v218, %v389
      %v391 = vpop.f32.mrb[0].mxu0
      %392 = vmatprep.mubr.bf16.mxu0 0
      %393 = vmatmul.mubr.bf16.gmra.mrb[0].mxu0 %v272
      %v394 = vpop.f32.mrb[0].mxu0
      %v395 = vadd.f32 %v218, %v394
      %v396 = vpop.f32.mrb[0].mxu0
      %v397 = vpop.f32.mrb[0].mxu0
      %v398 = vadd.f32 %v218, %v397
      %v399 = vpop.f32.mrb[0].mxu0
      %400 = vmatprep.mubr.bf16.mxu0 0
      %401 = vmatmul.mubr.bf16.gmra.mrb[0].mxu0 %v273
      %v402 = vpop.f32.mrb[0].mxu0
      %v403 = vadd.f32 %v218, %v402
      %v404 = vpop.f32.mrb[0].mxu0
      %v405 = vpop.f32.mrb[0].mxu0
      %v406 = vadd.f32 %v218, %v405
      %v407 = vpop.f32.mrb[0].mxu0
      %408 = vmatprep.mubr.bf16.mxu0 0
      %409 = vmatmul.mubr.bf16.gmra.mrb[0].mxu0 %v274
      %v410 = vpop.f32.mrb[0].mxu0
      %v411 = vadd.f32 %v218, %v410
      %v412 = vpop.f32.mrb[0].mxu0
      %v413 = vpop.f32.mrb[0].mxu0
      %v414 = vadd.f32 %v218, %v413
      %v415 = vpop.f32.mrb[0].mxu0
      %416 = vmatprep.mubr.bf16.mxu0 0
      %417 = vmatmul.mubr.bf16.gmra.mrb[0].mxu0 %v275
      %v418 = vpop.f32.mrb[0].mxu0
      %v419 = vadd.f32 %v218, %v418
      %v420 = vpop.f32.mrb[0].mxu0
      %v421 = vpop.f32.mrb[0].mxu0
      %v422 = vadd.f32 %v218, %v421
      %v423 = vpop.f32.mrb[0].mxu0
      %424 = vmatprep.mubr.bf16.mxu0 0
      %425 = vmatmul.mubr.bf16.gmra.mrb[0].mxu0 %v276
      %v426 = vpop.f32.mrb[0].mxu0
      %v427 = vadd.f32 %v218, %v426
      %v428 = vpop.f32.mrb[0].mxu0
      %v429 = vpop.f32.mrb[0].mxu0
      %v430 = vadd.f32 %v218, %v429
      %v431 = vpop.f32.mrb[0].mxu0
      %432 = vmatprep.mubr.bf16.mxu0 0
      %433 = vmatmul.mubr.bf16.gmra.mrb[0].mxu0 %v277
      %v434 = vpop.f32.mrb[0].mxu0
      %v435 = vadd.f32 %v218, %v434
      %v436 = vpop.f32.mrb[0].mxu0
      %v437 = vpop.f32.mrb[0].mxu0
      %v438 = vadd.f32 %v218, %v437
      %v439 = vpop.f32.mrb[0].mxu0
      %440 = vmatprep.mubr.bf16.mxu0 0
      %441 = vmatmul.mubr.bf16.gmra.mrb[0].mxu0 %v278
      %v442 = vpop.f32.mrb[0].mxu0
      %v443 = vadd.f32 %v218, %v442
      %v444 = vpop.f32.mrb[0].mxu0
      %v445 = vpop.f32.mrb[0].mxu0
      %v446 = vadd.f32 %v218, %v445
      %v447 = vpop.f32.mrb[0].mxu0
      %448 = vmatprep.mubr.bf16.mxu0 0
      %449 = vmatmul.mubr.bf16.gmra.mrb[0].mxu0 %v279
      %v450 = vpop.f32.mrb[0].mxu0
      %v451 = vadd.f32 %v218, %v450
      %v452 = vpop.f32.mrb[0].mxu0
      %v453 = vpop.f32.mrb[0].mxu0
      %v454 = vadd.f32 %v218, %v453
      %v455 = vpop.f32.mrb[0].mxu0
      %456 = vmatprep.mubr.bf16.mxu0 0
      %457 = vmatmul.mubr.bf16.gmra.mrb[0].mxu0 %v280
      %v458 = vpop.f32.mrb[0].mxu0
      %v459 = vadd.f32 %v218, %v458
      %v460 = vpop.f32.mrb[0].mxu0
      %v461 = vpop.f32.mrb[0].mxu0
      %v462 = vadd.f32 %v218, %v461
      %v463 = vpop.f32.mrb[0].mxu0
      %464 = vmatprep.mubr.bf16.mxu0 0
      %465 = vmatmul.mubr.bf16.gmra.mrb[0].mxu0 %v281
      %v466 = vpop.f32.mrb[0].mxu0
      %v467 = vadd.f32 %v218, %v466
      %v468 = vpop.f32.mrb[0].mxu0
      %v469 = vpop.f32.mrb[0].mxu0
      %v470 = vadd.f32 %v218, %v469
      %v471 = vpop.f32.mrb[0].mxu0
      %472 = vmatprep.mubr.bf16.mxu0 0
      %473 = vmatmul.mubr.bf16.gmra.mrb[0].mxu0 %v282
      %v474 = vpop.f32.mrb[0].mxu0
      %v475 = vadd.f32 %v218, %v474
      %v476 = vpop.f32.mrb[0].mxu0
      %v477 = vpop.f32.mrb[0].mxu0
      %v478 = vpop.f32.mrb[0].mxu0
      %479 = vdwg.mxu0
      %v480 = vpack.c.bf16 %v382, %v379
      %v481 = vpack.c.bf16 %v390, %v387
      %v482 = vpack.c.bf16 %v398, %v395
      %v483 = vpack.c.bf16 %v406, %v403
      %v484 = vpack.c.bf16 %v414, %v411
      %v485 = vpack.c.bf16 %v422, %v419
      %v486 = vpack.c.bf16 %v430, %v427
      %v487 = vpack.c.bf16 %v438, %v435
      %v488 = vpack.c.bf16 %v446, %v443
      %v489 = vpack.c.bf16 %v454, %v451
      %v490 = vpack.c.bf16 %v462, %v459
      %v491 = vpack.c.bf16 %v470, %v467
      %v492 = vpack.c.bf16 %v475, %v475
      %v506 = vunpack.c.l.b16 %v480
      %v507 = vunpack.c.h.b16 %v480
      %v508 = vunpack.c.l.b16 %v481
      %v509 = vunpack.c.h.b16 %v481
      %v510 = vunpack.c.l.b16 %v482
      %v511 = vunpack.c.h.b16 %v482
      %v512 = vunpack.c.l.b16 %v483
      %v513 = vunpack.c.h.b16 %v483
      %v514 = vunpack.c.l.b16 %v484
      %v515 = vunpack.c.h.b16 %v484
      %v516 = vunpack.c.l.b16 %v485
      %v517 = vunpack.c.h.b16 %v485
      %v518 = vunpack.c.l.b16 %v486
      %v519 = vunpack.c.h.b16 %v486
      %v520 = vunpack.c.l.b16 %v487
      %v521 = vunpack.c.h.b16 %v487
      %v522 = vunpack.c.l.b16 %v488
      %v523 = vunpack.c.h.b16 %v488
      %v524 = vunpack.c.l.b16 %v489
      %v525 = vunpack.c.h.b16 %v489
      %v526 = vunpack.c.l.b16 %v490
      %v527 = vunpack.c.h.b16 %v490
      %v528 = vunpack.c.l.b16 %v491
      %v529 = vunpack.c.h.b16 %v491
      %v530 = vunpack.c.l.b16 %v492
      %v531 = vpack.c.b16 %v506, %v506
      %v532 = vpack.c.b16 %v507, %v507
      %v533 = vpack.c.b16 %v508, %v508
      %v534 = vpack.c.b16 %v509, %v509
      %v535 = vpack.c.b16 %v510, %v510
      %v536 = vpack.c.b16 %v511, %v511
      %v537 = vpack.c.b16 %v512, %v512
      %v538 = vpack.c.b16 %v513, %v513
      %v539 = vpack.c.b16 %v514, %v514
      %v540 = vpack.c.b16 %v515, %v515
      %v541 = vpack.c.b16 %v516, %v516
      %v542 = vpack.c.b16 %v517, %v517
      %v543 = vpack.c.b16 %v518, %v518
      %v544 = vpack.c.b16 %v519, %v519
      %v545 = vpack.c.b16 %v520, %v520
      %v546 = vpack.c.b16 %v521, %v521
      %v547 = vpack.c.b16 %v522, %v522
      %v548 = vpack.c.b16 %v523, %v523
      %v549 = vpack.c.b16 %v524, %v524
      %v550 = vpack.c.b16 %v525, %v525
      %v551 = vpack.c.b16 %v526, %v526
      %v552 = vpack.c.b16 %v527, %v527
      %v553 = vpack.c.b16 %v528, %v528
      %v554 = vpack.c.b16 %v529, %v529
      %v555 = vpack.c.b16 %v530, %v530
      %vm581 = vcmask 60416
      %582 = vst.msk [vmem:[%s170] sm:$0xf] %vm581, %v531
      %583 = vst.msk [vmem:[%s170 + $0x4] sm:$0xf] %vm581, %v532
      %584 = vst.msk [vmem:[%s170 + $0x8] sm:$0xf] %vm581, %v533
      %585 = vst.msk [vmem:[%s170 + $0xc] sm:$0xf] %vm581, %v534
      %586 = vst.msk [vmem:[%s170 + $0x10] sm:$0xf] %vm581, %v535
      %587 = vst.msk [vmem:[%s170 + $0x14] sm:$0xf] %vm581, %v536
      %588 = vst.msk [vmem:[%s170 + $0x18] sm:$0xf] %vm581, %v537
      %589 = vst.msk [vmem:[%s170 + $0x1c] sm:$0xf] %vm581, %v538
      %590 = vst.msk [vmem:[%s170 + $0x20] sm:$0xf] %vm581, %v539
      %591 = vst.msk [vmem:[%s170 + $0x24] sm:$0xf] %vm581, %v540
      %592 = vst.msk [vmem:[%s170 + $0x28] sm:$0xf] %vm581, %v541
      %593 = vst.msk [vmem:[%s170 + $0x2c] sm:$0xf] %vm581, %v542
      %594 = vst.msk [vmem:[%s170 + $0x30] sm:$0xf] %vm581, %v543
      %595 = vst.msk [vmem:[%s170 + $0x34] sm:$0xf] %vm581, %v544
      %596 = vst.msk [vmem:[%s170 + $0x38] sm:$0xf] %vm581, %v545
      %597 = vst.msk [vmem:[%s170 + $0x3c] sm:$0xf] %vm581, %v546
      %598 = vst.msk [vmem:[%s170 + $0x40] sm:$0xf] %vm581, %v547
      %599 = vst.msk [vmem:[%s170 + $0x44] sm:$0xf] %vm581, %v548
      %600 = vst.msk [vmem:[%s170 + $0x48] sm:$0xf] %vm581, %v549
      %601 = vst.msk [vmem:[%s170 + $0x4c] sm:$0xf] %vm581, %v550
      %602 = vst.msk [vmem:[%s170 + $0x50] sm:$0xf] %vm581, %v551
      %603 = vst.msk [vmem:[%s170 + $0x54] sm:$0xf] %vm581, %v552
      %604 = vst.msk [vmem:[%s170 + $0x58] sm:$0xf] %vm581, %v553
      %605 = vst.msk [vmem:[%s170 + $0x5c] sm:$0xf] %vm581, %v554
      %vm606 = vcmask 58368
      %607 = vst.msk [vmem:[%s170 + $0x60] sm:$0x3] %vm606, %v555
      %p608 = scmp.lt.s32.totalorder %s14, 1
      %s609 = scalar_select %p608, %s14, 1
      %s610 = smul.addr %s609, 25
      %s611 = smul.addr %s610, 4
      %s612 = scalar_lea.vmem %s3, %s611
      // Predicated region
      $region33: #{lenet_forward.3} parent=31 // pred_check
        %p613 = pneg %p100
      $region34: #{lenet_forward.3} parent=31 // pred_check_branch
        %615 = sbr.rel (%p613) target = $region36
      $region35: #{lenet_forward.3} parent=31 // pred_region
        _
      $region36: #{lenet_forward.3} parent=31 // pred_fallthru
        _
    $region32: #{lenet_forward.3} parent=5 // pred_fallthru
      _
    %p616 = scmp.le.s32.totalorder 2, %s9
    // Predicated region
    $region37: #{lenet_forward.3} parent=5 // pred_check
      %p617 = pneg %p616
    $region38: #{lenet_forward.3} parent=5 // pred_check_branch
      %619 = sbr.rel (%p617) target = $region40
    $region39: #{lenet_forward.3} parent=5 // pred_region
      %s620 = ssub.s32 %s9, 2
      // Predicated region
      $region41: #{lenet_forward.3} parent=39 // pred_check
        %p621 = pneg %p106
      $region42: #{lenet_forward.3} parent=39 // pred_check_branch
        %623 = sbr.rel (%p621) target = $region44
      $region43: #{lenet_forward.3} parent=39 // pred_region
        %p624 = scmp.lt.s32.totalorder %s15, 1
        %s625 = scalar_select %p624, %s15, 1
        %s626 = smul.addr %s625, 25
        %s627 = smul.addr %s626, 4
        %s628 = scalar_lea.vmem %s3, %s627
      $region44: #{lenet_forward.3} parent=39 // pred_fallthru
        _
    $region40: #{lenet_forward.3} parent=5 // pred_fallthru
      _
  $region6: #{lenet_forward.3} parent=0 // loop_footer
    %s13 = sadd.s32 1, %s9
  $region7: #{lenet_forward.3} parent=0 // loop_footer_branch
    %8 = sbr.rel target = $region3
  $region8: #{lenet_forward.3} parent=0 // loop_exit
    _

// kernel: lenet_forward.4
$region0: #{lenet_forward.4}
  #allocation0 [shape = 'u32[]', space=smem, size = 0x4, offset = 0x4, fixed_abs, tag = 'smem constant byte address 0x4 - core index']
  #allocation1 [shape = 'u32[144,128]{1,0:T(1,128)}', space=vmem, size = 0x12000, scoped, tag = 'internal scratch']
  %s0 = inlined_call_operand.vmem [shape: bf16[2,25,256], index: 0, kind: input, shape index: {}]
  %s1 = inlined_call_operand.vmem [shape: bf16[256,128], index: 1, kind: input, shape index: {}]
  %s2 = inlined_call_operand.vmem [shape: f32[1,128], index: 2, kind: input, shape index: {}]
  %s3 = inlined_call_operand.vmem [shape: bf16[2,25,16], index: 3, kind: output, shape index: {}]
  %s4 = sld [smem:[#allocation0]]
  $region45: #{lenet_forward.4} parent=0
    _
  %s6 = ssub.s32 1, %s4
  %s7 = scalar_select 0, %s6, %s4
  loop: start=0, step=1, limit=4
  $region2: #{lenet_forward.4} parent=0 // loop_pre_header
    _
  $region3: #{lenet_forward.4} parent=0 // loop_header
    %s9 = sphi 0, %s13
    %p10 = scmp.ge.s32.totalorder %s9, 4
    %s19 = sphi 0, %s21
    %s22 = sphi 0, %s19
    %s23 = sphi 0, %s22
    %s39 = sphi 0, %s23
    %s43 = sphi 0, %s43
    %s45 = sphi 0, %s43
    %s46 = sphi 0, %s45
    %s60 = sphi 0, %s46
    %s64 = sphi 0, %s64
    %s66 = sphi 0, %s64
    %s67 = sphi 0, %s66
    %s81 = sphi 0, %s67
    %s87 = sphi 0, %s89
    %s90 = sphi 0, %s87
    %s91 = sphi 0, %s90
    %s107 = sphi 0, %s91
  $region4: #{lenet_forward.4} parent=0 // loop_header_branch
    %12 = sbr.rel (%p10) target = $region8
  $region5: #{lenet_forward.4} parent=0 // loop_body
    %s14 = ssub.s32 %s9, 1
    %s15 = ssub.s32 %s9, 2
    %s16 = sadd.s32 %s9, 1
    %s17 = ssub.s32 %s9, %s16
    %p18 = scmp.eq.s32.totalorder %s17, 0
    %s20 = sadd.s32 %s19, 1
    %s21 = scalar_select %p18, %s19, %s20
    %p24 = pneg %p18
    %p25 = scmp.eq.s32.totalorder %s9, 1
    %p26 = por %p24, %p25
    %p27 = scmp.ne.s32.totalorder %s19, %s22
    %p28 = scmp.eq.s32.totalorder %s9, 0
    %p29 = por %p27, %p28
    %p30 = scmp.ne.s32.totalorder %s19, %s22
    %p31 = scmp.eq.s32.totalorder %s14, 1
    %p32 = por %p30, %p31
    %p33 = scmp.ne.s32.totalorder %s22, %s23
    %p34 = scmp.eq.s32.totalorder %s14, 0
    %p35 = por %p33, %p34
    %p36 = scmp.ne.s32.totalorder %s22, %s23
    %p37 = scmp.eq.s32.totalorder %s15, 1
    %p38 = por %p36, %p37
    %p40 = scmp.ne.s32.totalorder %s23, %s39
    %p41 = scmp.eq.s32.totalorder %s15, 0
    %p42 = por %p40, %p41
    %s44 = sadd.s32 %s43, 1
    %p47 = scmp.eq.s32.totalorder %s9, 1
    %p48 = scmp.ne.s32.totalorder %s43, %s45
    %p49 = scmp.eq.s32.totalorder %s9, 0
    %p50 = por %p48, %p49
    %p51 = scmp.ne.s32.totalorder %s43, %s45
    %p52 = scmp.eq.s32.totalorder %s14, 1
    %p53 = por %p51, %p52
    %p54 = scmp.ne.s32.totalorder %s45, %s46
    %p55 = scmp.eq.s32.totalorder %s14, 0
    %p56 = por %p54, %p55
    %p57 = scmp.ne.s32.totalorder %s45, %s46
    %p58 = scmp.eq.s32.totalorder %s15, 1
    %p59 = por %p57, %p58
    %p61 = scmp.ne.s32.totalorder %s46, %s60
    %p62 = scmp.eq.s32.totalorder %s15, 0
    %p63 = por %p61, %p62
    %s65 = sadd.s32 %s64, 1
    %p68 = scmp.eq.s32.totalorder %s9, 1
    %p69 = scmp.ne.s32.totalorder %s64, %s66
    %p70 = scmp.eq.s32.totalorder %s9, 0
    %p71 = por %p69, %p70
    %p72 = scmp.ne.s32.totalorder %s64, %s66
    %p73 = scmp.eq.s32.totalorder %s14, 1
    %p74 = por %p72, %p73
    %p75 = scmp.ne.s32.totalorder %s66, %s67
    %p76 = scmp.eq.s32.totalorder %s14, 0
    %p77 = por %p75, %p76
    %p78 = scmp.ne.s32.totalorder %s66, %s67
    %p79 = scmp.eq.s32.totalorder %s15, 1
    %p80 = por %p78, %p79
    %p82 = scmp.ne.s32.totalorder %s67, %s81
    %p83 = scmp.eq.s32.totalorder %s15, 0
    %p84 = por %p82, %p83
    %s85 = ssub.s32 %s9, %s16
    %p86 = scmp.eq.s32.totalorder %s85, 0
    %s88 = sadd.s32 %s87, 1
    %s89 = scalar_select %p86, %s87, %s88
    %p92 = pneg %p86
    %p93 = scmp.eq.s32.totalorder %s9, 1
    %p94 = por %p92, %p93
    %p95 = scmp.ne.s32.totalorder %s87, %s90
    %p96 = scmp.eq.s32.totalorder %s9, 0
    %p97 = por %p95, %p96
    %p98 = scmp.ne.s32.totalorder %s87, %s90
    %p99 = scmp.eq.s32.totalorder %s14, 1
    %p100 = por %p98, %p99
    %p101 = scmp.ne.s32.totalorder %s90, %s91
    %p102 = scmp.eq.s32.totalorder %s14, 0
    %p103 = por %p101, %p102
    %p104 = scmp.ne.s32.totalorder %s90, %s91
    %p105 = scmp.eq.s32.totalorder %s15, 1
    %p106 = por %p104, %p105
    %p108 = scmp.ne.s32.totalorder %s91, %s107
    %p109 = scmp.eq.s32.totalorder %s15, 0
    %p110 = por %p108, %p109
    %p111 = scmp.le.s32.totalorder 1, %s9
    %p112 = scmp.lt.s32.totalorder %s9, 3
    %p113 = pnand %p111, %p112
    %p114 = pneg %p113
    // Predicated region
    $region9: #{lenet_forward.4} parent=5 // pred_check
      _
    $region10: #{lenet_forward.4} parent=5 // pred_check_branch
      %116 = sbr.rel (%p113) target = $region12
    $region11: #{lenet_forward.4} parent=5 // pred_region
      %s117 = ssub.s32 %s9, 1
      // Predicated region
      $region13: #{lenet_forward.4} parent=11 // pred_check
        %p118 = pneg %p56
      $region14: #{lenet_forward.4} parent=11 // pred_check_branch
        %120 = sbr.rel (%p118) target = $region16
      $region15: #{lenet_forward.4} parent=11 // pred_region
        _
      $region16: #{lenet_forward.4} parent=11 // pred_fallthru
        _
      // Predicated region
      $region17: #{lenet_forward.4} parent=11 // pred_check
        %p121 = pneg %p77
      $region18: #{lenet_forward.4} parent=11 // pred_check_branch
        %123 = sbr.rel (%p121) target = $region20
      $region19: #{lenet_forward.4} parent=11 // pred_region
        _
      $region20: #{lenet_forward.4} parent=11 // pred_fallthru
        _
    $region12: #{lenet_forward.4} parent=5 // pred_fallthru
      _
    %p124 = scmp.lt.s32.totalorder %s9, 2
    // Predicated region
    $region21: #{lenet_forward.4} parent=5 // pred_check
      %p125 = pneg %p124
    $region22: #{lenet_forward.4} parent=5 // pred_check_branch
      %127 = sbr.rel (%p125) target = $region24
    $region23: #{lenet_forward.4} parent=5 // pred_region
      // Predicated region
      $region25: #{lenet_forward.4} parent=23 // pred_check
        %p128 = pneg %p29
      $region26: #{lenet_forward.4} parent=23 // pred_check_branch
        %130 = sbr.rel (%p128) target = $region28
      $region27: #{lenet_forward.4} parent=23 // pred_region
        %p131 = scmp.lt.s32.totalorder %s9, 1
        %s132 = scalar_select %p131, %s9, 1
        %s133 = smul.addr %s132, 8
        %s134 = smul.addr %s133, 4
        %s135 = scalar_lea.vmem %s0, %s134
      $region28: #{lenet_forward.4} parent=23 // pred_fallthru
        _
    $region24: #{lenet_forward.4} parent=5 // pred_fallthru
      _
    %p136 = scmp.le.s32.totalorder 1, %s9
    %p137 = scmp.lt.s32.totalorder %s9, 3
    %p138 = pnand %p136, %p137
    %p139 = pneg %p138
    // Predicated region
    $region29: #{lenet_forward.4} parent=5 // pred_check
      _
    $region30: #{lenet_forward.4} parent=5 // pred_check_branch
      %141 = sbr.rel (%p138) target = $region32
    $region31: #{lenet_forward.4} parent=5 // pred_region
      %s142 = ssub.s32 %s9, 1
      %p143 = scmp.lt.s32.totalorder %s14, 1
      %s144 = scalar_select %p143, %s14, 1
      %s145 = smul.addr %s144, 8
      %s146 = smul.addr %s145, 4
      %s147 = scalar_lea.vmem %s0, %s146
      %p148 = pneg %p35
      %p149 = pneg %p32
      %p150 = pneg %p56
      %p151 = pneg %p53
      %p152 = pneg %p77
      %p153 = pneg %p74
      %p154 = pneg %p103
      %p155 = pneg %p100
      %p156 = scmp.lt.s32.totalorder %s14, 1
      %s157 = scalar_select %p156, %s14, 1
      %s158 = smul.addr %s157, 4
      %s159 = smul.addr %s158, 4
      %s160 = scalar_lea.vmem %s3, %s159
      %p161 = scmp.lt.s32.totalorder %s14, 1
      %s162 = scalar_select %p161, %s14, 1
      %s163 = smul.addr %s162, 8
      %s164 = smul.addr %s163, 4
      %s165 = scalar_lea.vmem %s0, %s164
      %p166 = scmp.lt.s32.totalorder %s14, 1
      %s167 = scalar_select %p166, %s14, 1
      %s168 = smul.addr %s167, 4
      %s169 = smul.addr %s168, 4
      %s170 = scalar_lea.vmem %s3, %s169
      %v172 = vld [vmem:[%s165] sm:$0xff]
      %v173 = vld [vmem:[%s165 + $0x8] sm:$0xff]
      %v174 = vld [vmem:[%s165 + $0x10] sm:$0xff]
      %v175 = vld [vmem:[%s165 + $0x18] sm:$0x11]
      %v176 = vld [vmem:[%s1] sm:$0xf]
      %v177 = vld [vmem:[%s1 + $0x4] sm:$0xf]
      %v178 = vld [vmem:[%s1 + $0x8] sm:$0xf]
      %v179 = vld [vmem:[%s1 + $0xc] sm:$0xf]
      %v180 = vld [vmem:[%s1 + $0x10] sm:$0xf]
      %v181 = vld [vmem:[%s1 + $0x14] sm:$0xf]
      %v182 = vld [vmem:[%s1 + $0x18] sm:$0xf]
      %v183 = vld [vmem:[%s1 + $0x1c] sm:$0xf]
      %v184 = vld [vmem:[%s1 + $0x20] sm:$0xf]
      %v185 = vld [vmem:[%s1 + $0x24] sm:$0xf]
      %v186 = vld [vmem:[%s1 + $0x28] sm:$0xf]
      %v187 = vld [vmem:[%s1 + $0x2c] sm:$0xf]
      %v188 = vld [vmem:[%s1 + $0x30] sm:$0xf]
      %v189 = vld [vmem:[%s1 + $0x34] sm:$0xf]
      %v190 = vld [vmem:[%s1 + $0x38] sm:$0xf]
      %v191 = vld [vmem:[%s1 + $0x3c] sm:$0xf]
      %v192 = vld [vmem:[%s1 + $0x40] sm:$0xf]
      %v193 = vld [vmem:[%s1 + $0x44] sm:$0xf]
      %v194 = vld [vmem:[%s1 + $0x48] sm:$0xf]
      %v195 = vld [vmem:[%s1 + $0x4c] sm:$0xf]
      %v196 = vld [vmem:[%s1 + $0x50] sm:$0xf]
      %v197 = vld [vmem:[%s1 + $0x54] sm:$0xf]
      %v198 = vld [vmem:[%s1 + $0x58] sm:$0xf]
      %v199 = vld [vmem:[%s1 + $0x5c] sm:$0xf]
      %v200 = vld [vmem:[%s1 + $0x60] sm:$0xf]
      %v201 = vld [vmem:[%s1 + $0x64] sm:$0xf]
      %v202 = vld [vmem:[%s1 + $0x68] sm:$0xf]
      %v203 = vld [vmem:[%s1 + $0x6c] sm:$0xf]
      %v204 = vld [vmem:[%s1 + $0x70] sm:$0xf]
      %v205 = vld [vmem:[%s1 + $0x74] sm:$0xf]
      %v206 = vld [vmem:[%s1 + $0x78] sm:$0xf]
      %v207 = vld [vmem:[%s1 + $0x7c] sm:$0xf]
      %v208 = vld [vmem:[%s2] sm:$0x1]
      %v210 = vlaneseq
      %v211 = vshrl.u32 %v210, 7
      %v212 = vsub.s32 0, %v211
      %v213 = vrot.slane %v208, %v212
      %v219 = vunpack.c.l.b16 %v172
      %v220 = vunpack.c.h.b16 %v172
      %v221 = vunpack.c.l.b16 %v173
      %v222 = vunpack.c.h.b16 %v173
      %v223 = vunpack.c.l.b16 %v174
      %v224 = vunpack.c.h.b16 %v174
      %v225 = vunpack.c.l.b16 %v175
      %v226 = vunpack.c.h.b16 %v175
      %v227 = vpack.c.b16 %v221, %v219
      %v228 = vpack.c.b16 %v222, %v220
      %v229 = vpack.c.b16 %v225, %v223
      %v230 = vpack.c.b16 %v226, %v224
      %v267 = vunpack.c.l.b16 %v176
      %v268 = vunpack.c.l.b16 %v177
      %v269 = vunpack.c.l.b16 %v178
      %v270 = vunpack.c.l.b16 %v179
      %v271 = vunpack.c.l.b16 %v180
      %v272 = vunpack.c.l.b16 %v181
      %v273 = vunpack.c.l.b16 %v182
      %v274 = vunpack.c.l.b16 %v183
      %v275 = vunpack.c.l.b16 %v184
      %v276 = vunpack.c.l.b16 %v185
      %v277 = vunpack.c.l.b16 %v186
      %v278 = vunpack.c.l.b16 %v187
      %v279 = vunpack.c.l.b16 %v188
      %v280 = vunpack.c.l.b16 %v189
      %v281 = vunpack.c.l.b16 %v190
      %v282 = vunpack.c.l.b16 %v191
      %v283 = vunpack.c.l.b16 %v192
      %v284 = vunpack.c.l.b16 %v193
      %v285 = vunpack.c.l.b16 %v194
      %v286 = vunpack.c.l.b16 %v195
      %v287 = vunpack.c.l.b16 %v196
      %v288 = vunpack.c.l.b16 %v197
      %v289 = vunpack.c.l.b16 %v198
      %v290 = vunpack.c.l.b16 %v199
      %v291 = vunpack.c.l.b16 %v200
      %v292 = vunpack.c.l.b16 %v201
      %v293 = vunpack.c.l.b16 %v202
      %v294 = vunpack.c.l.b16 %v203
      %v295 = vunpack.c.l.b16 %v204
      %v296 = vunpack.c.l.b16 %v205
      %v297 = vunpack.c.l.b16 %v206
      %v298 = vunpack.c.l.b16 %v207
      %v299 = vpack.c.b16 %v268, %v267
      %v300 = vpack.c.b16 %v270, %v269
      %v301 = vpack.c.b16 %v272, %v271
      %v302 = vpack.c.b16 %v274, %v273
      %v303 = vpack.c.b16 %v276, %v275
      %v304 = vpack.c.b16 %v278, %v277
      %v305 = vpack.c.b16 %v280, %v279
      %v306 = vpack.c.b16 %v282, %v281
      %v307 = vpack.c.b16 %v284, %v283
      %v308 = vpack.c.b16 %v286, %v285
      %v309 = vpack.c.b16 %v288, %v287
      %v310 = vpack.c.b16 %v290, %v289
      %v311 = vpack.c.b16 %v292, %v291
      %v312 = vpack.c.b16 %v294, %v293
      %v313 = vpack.c.b16 %v296, %v295
      %v314 = vpack.c.b16 %v298, %v297
      %331 = vmatprep.subr.bf16.mxu0 0
      %332 = vmatpush1.bf16.msra.mxu0 %v299
      %333 = vmatprep.subr.bf16.mxu0 0
      %334 = vmatpush1.bf16.msra.mxu0 %v300
      %335 = vmatprep.subr.bf16.mxu0 0
      %336 = vmatpush1.bf16.msra.mxu0 %v301
      %337 = vmatprep.subr.bf16.mxu0 0
      %338 = vmatpush1.bf16.msra.mxu0 %v302
      %339 = vmatprep.subr.bf16.mxu0 0
      %340 = vmatpush1.bf16.msra.mxu0 %v303
      %341 = vmatprep.subr.bf16.mxu0 0
      %342 = vmatpush1.bf16.msra.mxu0 %v304
      %343 = vmatprep.subr.bf16.mxu0 0
      %344 = vmatpush1.bf16.msra.mxu0 %v305
      %345 = vmatprep.subr.bf16.mxu0 0
      %346 = vmatpush1.bf16.msra.mxu0 %v306
      %347 = vmatprep.subr.bf16.mxu0 0
      %348 = vmatpush1.bf16.msra.mxu0 %v307
      %349 = vmatprep.subr.bf16.mxu0 0
      %350 = vmatpush1.bf16.msra.mxu0 %v308
      %351 = vmatprep.subr.bf16.mxu0 0
      %352 = vmatpush1.bf16.msra.mxu0 %v309
      %353 = vmatprep.subr.bf16.mxu0 0
      %354 = vmatpush1.bf16.msra.mxu0 %v310
      %355 = vmatprep.subr.bf16.mxu0 0
      %356 = vmatpush1.bf16.msra.mxu0 %v311
      %357 = vmatprep.subr.bf16.mxu0 0
      %358 = vmatpush1.bf16.msra.mxu0 %v312
      %359 = vmatprep.subr.bf16.mxu0 0
      %360 = vmatpush1.bf16.msra.mxu0 %v313
      %361 = vmatprep.subr.bf16.mxu0 0
      %362 = vmatpush1.bf16.msra.mxu0 %v314
      %363 = vmatprep.mubr.bf16.mxu0 %v228
      %364 = vmatmul.mubr.bf16.gmra.mrb[0].mxu0 %v227
      %v365 = vpop.f32.mrb[0].mxu0
      %v366 = vadd.f32 %v213, %v365
      %v367 = vpop.f32.mrb[0].mxu0
      %v368 = vpop.f32.mrb[0].mxu0
      %v369 = vadd.f32 %v213, %v368
      %v370 = vpop.f32.mrb[0].mxu0
      %371 = vmatprep.mubr.bf16.mxu0 %v230
      %372 = vmatmul.mubr.bf16.gmra.mrb[0].mxu0 %v229
      %v373 = vpop.f32.mrb[0].mxu0
      %v374 = vadd.f32 %v213, %v373
      %v375 = vpop.f32.mrb[0].mxu0
      %v376 = vpop.f32.mrb[0].mxu0
      %v377 = vadd.f32 %v213, %v376
      %v378 = vpop.f32.mrb[0].mxu0
      %379 = vdwg.mxu0
      %v380 = vpack.c.bf16 %v369, %v366
      %v381 = vpack.c.bf16 %v377, %v374
      %v384 = vunpack.c.l.b16 %v380
      %v385 = vunpack.c.h.b16 %v380
      %v386 = vunpack.c.l.b16 %v381
      %v387 = vunpack.c.h.b16 %v381
      %v388 = vpack.c.b16 %v384, %v384
      %v389 = vpack.c.b16 %v385, %v385
      %v390 = vpack.c.b16 %v386, %v386
      %v391 = vpack.c.b16 %v387, %v387
      %vm396 = vcmask 125952
      %397 = vst.msk [vmem:[%s170] sm:$0xf] %vm396, %v388
      %398 = vst.msk [vmem:[%s170 + $0x4] sm:$0xf] %vm396, %v389
      %399 = vst.msk [vmem:[%s170 + $0x8] sm:$0xf] %vm396, %v390
      %vm400 = vcmask 122880
      %vm401 = vsmask.f32 256
      %vm402 = vmand %vm400, %vm401
      %v403 = vld [vmem:[%s170 + $0xc] sm:$0x1]
      %v404 = vsel %vm402, %v391, %v403
      %405 = vst [vmem:[%s170 + $0xc] sm:$0x1] %v404
      %p406 = scmp.lt.s32.totalorder %s14, 1
      %s407 = scalar_select %p406, %s14, 1
      %s408 = smul.addr %s407, 4
      %s409 = smul.addr %s408, 4
      %s410 = scalar_lea.vmem %s3, %s409
      // Predicated region
      $region33: #{lenet_forward.4} parent=31 // pred_check
        %p411 = pneg %p100
      $region34: #{lenet_forward.4} parent=31 // pred_check_branch
        %413 = sbr.rel (%p411) target = $region36
      $region35: #{lenet_forward.4} parent=31 // pred_region
        _
      $region36: #{lenet_forward.4} parent=31 // pred_fallthru
        _
    $region32: #{lenet_forward.4} parent=5 // pred_fallthru
      _
    %p414 = scmp.le.s32.totalorder 2, %s9
    // Predicated region
    $region37: #{lenet_forward.4} parent=5 // pred_check
      %p415 = pneg %p414
    $region38: #{lenet_forward.4} parent=5 // pred_check_branch
      %417 = sbr.rel (%p415) target = $region40
    $region39: #{lenet_forward.4} parent=5 // pred_region
      %s418 = ssub.s32 %s9, 2
      // Predicated region
      $region41: #{lenet_forward.4} parent=39 // pred_check
        %p419 = pneg %p106
      $region42: #{lenet_forward.4} parent=39 // pred_check_branch
        %421 = sbr.rel (%p419) target = $region44
      $region43: #{lenet_forward.4} parent=39 // pred_region
        %p422 = scmp.lt.s32.totalorder %s15, 1
        %s423 = scalar_select %p422, %s15, 1
        %s424 = smul.addr %s423, 4
        %s425 = smul.addr %s424, 4
        %s426 = scalar_lea.vmem %s3, %s425
      $region44: #{lenet_forward.4} parent=39 // pred_fallthru
        _
    $region40: #{lenet_forward.4} parent=5 // pred_fallthru
      _
  $region6: #{lenet_forward.4} parent=0 // loop_footer
    %s13 = sadd.s32 1, %s9
  $region7: #{lenet_forward.4} parent=0 // loop_footer_branch
    %8 = sbr.rel target = $region3
  $region8: #{lenet_forward.4} parent=0 // loop_exit
    _

// kernel: lenet_forward.5
$region0: #{lenet_forward.5}
  #allocation0 [shape = 'u32[]', space=smem, size = 0x4, offset = 0x4, fixed_abs, tag = 'smem constant byte address 0x4 - core index']
  #allocation1 [shape = 'u32[144,128]{1,0:T(1,128)}', space=vmem, size = 0x12000, scoped, tag = 'internal scratch']
  %s0 = inlined_call_operand.vmem [shape: bf16[2,400], index: 0, kind: input, shape index: {}]
  %s1 = inlined_call_operand.vmem [shape: bf16[400,128], index: 1, kind: input, shape index: {}]
  %s2 = inlined_call_operand.vmem [shape: f32[1,128], index: 2, kind: input, shape index: {}]
  %s3 = inlined_call_operand.vmem [shape: bf16[128,128], index: 3, kind: input, shape index: {}]
  %s4 = inlined_call_operand.vmem [shape: f32[1,128], index: 4, kind: input, shape index: {}]
  %s5 = inlined_call_operand.vmem [shape: bf16[128,128], index: 5, kind: input, shape index: {}]
  %s6 = inlined_call_operand.vmem [shape: f32[1,128], index: 6, kind: input, shape index: {}]
  %s7 = inlined_call_operand.hbm [shape: f32[2,128], index: 7, kind: output, shape index: {}]
  %s8 = sld [smem:[#allocation0]]
  $region38: #{lenet_forward.5} parent=0
    _
  %s10 = ssub.s32 1, %s8
  %s11 = scalar_select 0, %s10, %s8
  $region1: #{lenet_forward.5} parent=0
    #allocation2 [shape = 'u8[1024]{0}', space=vmem, size = 0x400, scoped, tag = 'output window, operand 0, single buffered']
    #allocation3 [shape = 's32[1]{0}', space=sflag, size = 0x4, scoped, tag = 'scoped memory for lenet_forward.5']
    %12 = vsyncpa [#allocation3], 0
    // Predicated region
    $region2: #{lenet_forward.5} parent=1 // pred_check
      _
    $region3: #{lenet_forward.5} parent=1 // pred_check_branch
      %14 = sbr.rel (0) target = $region5
    $region4: #{lenet_forward.5} parent=1 // pred_region
      _
    $region5: #{lenet_forward.5} parent=1 // pred_fallthru
      _
    // Predicated region
    $region6: #{lenet_forward.5} parent=1 // pred_check
      _
    $region7: #{lenet_forward.5} parent=1 // pred_check_branch
      %16 = sbr.rel (0) target = $region9
    $region8: #{lenet_forward.5} parent=1 // pred_region
      _
    $region9: #{lenet_forward.5} parent=1 // pred_fallthru
      _
    // Predicated region
    $region10: #{lenet_forward.5} parent=1 // pred_check
      _
    $region11: #{lenet_forward.5} parent=1 // pred_check_branch
      %18 = sbr.rel (0) target = $region13
    $region12: #{lenet_forward.5} parent=1 // pred_region
      _
    $region13: #{lenet_forward.5} parent=1 // pred_fallthru
      _
    // Predicated region
    $region14: #{lenet_forward.5} parent=1 // pred_check
      _
    $region15: #{lenet_forward.5} parent=1 // pred_check_branch
      %20 = sbr.rel (0) target = $region17
    $region16: #{lenet_forward.5} parent=1 // pred_region
      _
    $region17: #{lenet_forward.5} parent=1 // pred_fallthru
      _
    // Predicated region
    $region18: #{lenet_forward.5} parent=1 // pred_check
      _
    $region19: #{lenet_forward.5} parent=1 // pred_check_branch
      %22 = sbr.rel (0) target = $region21
    $region20: #{lenet_forward.5} parent=1 // pred_region
      _
    $region21: #{lenet_forward.5} parent=1 // pred_fallthru
      _
    // Predicated region
    $region22: #{lenet_forward.5} parent=1 // pred_check
      _
    $region23: #{lenet_forward.5} parent=1 // pred_check_branch
      %24 = sbr.rel (0) target = $region25
    $region24: #{lenet_forward.5} parent=1 // pred_region
      _
    $region25: #{lenet_forward.5} parent=1 // pred_fallthru
      _
    // Predicated region
    $region26: #{lenet_forward.5} parent=1 // pred_check
      _
    $region27: #{lenet_forward.5} parent=1 // pred_check_branch
      %26 = sbr.rel (0) target = $region29
    $region28: #{lenet_forward.5} parent=1 // pred_region
      _
    $region29: #{lenet_forward.5} parent=1 // pred_fallthru
      _
    %v28 = vld [vmem:[%s0] sm:$0xf]
    %v29 = vld [vmem:[%s1] sm:$0xf]
    %v30 = vld [vmem:[%s1 + $0x4] sm:$0xf]
    %v31 = vld [vmem:[%s1 + $0x8] sm:$0xf]
    %v32 = vld [vmem:[%s1 + $0xc] sm:$0xf]
    %v33 = vld [vmem:[%s1 + $0x10] sm:$0xf]
    %v34 = vld [vmem:[%s1 + $0x14] sm:$0xf]
    %v35 = vld [vmem:[%s1 + $0x18] sm:$0xf]
    %v36 = vld [vmem:[%s1 + $0x1c] sm:$0xf]
    %v37 = vld [vmem:[%s1 + $0x20] sm:$0xf]
    %v38 = vld [vmem:[%s1 + $0x24] sm:$0xf]
    %v39 = vld [vmem:[%s1 + $0x28] sm:$0xf]
    %v40 = vld [vmem:[%s1 + $0x2c] sm:$0xf]
    %v41 = vld [vmem:[%s1 + $0x30] sm:$0xf]
    %v42 = vld [vmem:[%s1 + $0x34] sm:$0xf]
    %v43 = vld [vmem:[%s1 + $0x38] sm:$0xf]
    %v44 = vld [vmem:[%s1 + $0x3c] sm:$0xf]
    %v45 = vld [vmem:[%s1 + $0x40] sm:$0xf]
    %v46 = vld [vmem:[%s1 + $0x44] sm:$0xf]
    %v47 = vld [vmem:[%s1 + $0x48] sm:$0xf]
    %v48 = vld [vmem:[%s1 + $0x4c] sm:$0xf]
    %v49 = vld [vmem:[%s1 + $0x50] sm:$0xf]
    %v50 = vld [vmem:[%s1 + $0x54] sm:$0xf]
    %v51 = vld [vmem:[%s1 + $0x58] sm:$0xf]
    %v52 = vld [vmem:[%s1 + $0x5c] sm:$0xf]
    %v53 = vld [vmem:[%s1 + $0x60] sm:$0xf]
    %v54 = vld [vmem:[%s1 + $0x64] sm:$0xf]
    %v55 = vld [vmem:[%s1 + $0x68] sm:$0xf]
    %v56 = vld [vmem:[%s1 + $0x6c] sm:$0xf]
    %v57 = vld [vmem:[%s1 + $0x70] sm:$0xf]
    %v58 = vld [vmem:[%s1 + $0x74] sm:$0xf]
    %v59 = vld [vmem:[%s1 + $0x78] sm:$0xf]
    %v60 = vld [vmem:[%s1 + $0x7c] sm:$0xf]
    %v61 = vld [vmem:[%s1 + $0x80] sm:$0xf]
    %v62 = vld [vmem:[%s1 + $0x84] sm:$0xf]
    %v63 = vld [vmem:[%s1 + $0x88] sm:$0xf]
    %v64 = vld [vmem:[%s1 + $0x8c] sm:$0xf]
    %v65 = vld [vmem:[%s1 + $0x90] sm:$0xf]
    %v66 = vld [vmem:[%s1 + $0x94] sm:$0xf]
    %v67 = vld [vmem:[%s1 + $0x98] sm:$0xf]
    %v68 = vld [vmem:[%s1 + $0x9c] sm:$0xf]
    %v69 = vld [vmem:[%s1 + $0xa0] sm:$0xf]
    %v70 = vld [vmem:[%s1 + $0xa4] sm:$0xf]
    %v71 = vld [vmem:[%s1 + $0xa8] sm:$0xf]
    %v72 = vld [vmem:[%s1 + $0xac] sm:$0xf]
    %v73 = vld [vmem:[%s1 + $0xb0] sm:$0xf]
    %v74 = vld [vmem:[%s1 + $0xb4] sm:$0xf]
    %v75 = vld [vmem:[%s1 + $0xb8] sm:$0xf]
    %v76 = vld [vmem:[%s1 + $0xbc] sm:$0xf]
    %v77 = vld [vmem:[%s1 + $0xc0] sm:$0xf]
    %v78 = vld [vmem:[%s1 + $0xc4] sm:$0xf]
    %v79 = vld [vmem:[%s2] sm:$0x1]
    %v81 = vlaneseq
    %v82 = vshrl.u32 %v81, 7
    %v83 = vsub.s32 0, %v82
    %v84 = vrot.slane %v79, %v83
    %v88 = vunpack.c.l.s4 1966171168
    %v89 = vunpack.c.0.s8 %v88
    %v90 = vlaneseq
    %v91 = vshrl.u32 %v90, 7
    %v92 = vsub.s32 %v89, %v91
    %v93 = vrot.slane %v28, %v92
    %v94 = vcombine.high %v93, %v93
    %v96 = vunpack.c.l.s4 1966171168
    %v97 = vunpack.c.0.s8 %v96
    %v98 = vlaneseq
    %v99 = vshrl.u32 %v98, 7
    %v100 = vsub.s32 %v97, %v99
    %v101 = vrot.slane %v93, %v100
    %v103 = vunpack.c.l.s4 1966171168
    %v104 = vunpack.c.0.s8 %v103
    %v105 = vlaneseq
    %v106 = vshrl.u32 %v105, 7
    %v107 = vsub.s32 %v104, %v106
    %v108 = vrot.slane %v94, %v107
    %v109 = vcombine.high %v101, %v101
    %v110 = vcombine.high %v108, %v108
    %v164 = vunpack.c.l.b16 %v29
    %v165 = vunpack.c.l.b16 %v30
    %v166 = vunpack.c.l.b16 %v31
    %v167 = vunpack.c.l.b16 %v32
    %v168 = vunpack.c.l.b16 %v33
    %v169 = vunpack.c.l.b16 %v34
    %v170 = vunpack.c.l.b16 %v35
    %v171 = vunpack.c.l.b16 %v36
    %v172 = vunpack.c.l.b16 %v37
    %v173 = vunpack.c.l.b16 %v38
    %v174 = vunpack.c.l.b16 %v39
    %v175 = vunpack.c.l.b16 %v40
    %v176 = vunpack.c.l.b16 %v41
    %v177 = vunpack.c.l.b16 %v42
    %v178 = vunpack.c.l.b16 %v43
    %v179 = vunpack.c.l.b16 %v44
    %v180 = vunpack.c.l.b16 %v45
    %v181 = vunpack.c.l.b16 %v46
    %v182 = vunpack.c.l.b16 %v47
    %v183 = vunpack.c.l.b16 %v48
    %v184 = vunpack.c.l.b16 %v49
    %v185 = vunpack.c.l.b16 %v50
    %v186 = vunpack.c.l.b16 %v51
    %v187 = vunpack.c.l.b16 %v52
    %v188 = vunpack.c.l.b16 %v53
    %v189 = vunpack.c.l.b16 %v54
    %v190 = vunpack.c.l.b16 %v55
    %v191 = vunpack.c.l.b16 %v56
    %v192 = vunpack.c.l.b16 %v57
    %v193 = vunpack.c.l.b16 %v58
    %v194 = vunpack.c.l.b16 %v59
    %v195 = vunpack.c.l.b16 %v60
    %v196 = vunpack.c.l.b16 %v61
    %v197 = vunpack.c.l.b16 %v62
    %v198 = vunpack.c.l.b16 %v63
    %v199 = vunpack.c.l.b16 %v64
    %v200 = vunpack.c.l.b16 %v65
    %v201 = vunpack.c.l.b16 %v66
    %v202 = vunpack.c.l.b16 %v67
    %v203 = vunpack.c.l.b16 %v68
    %v204 = vunpack.c.l.b16 %v69
    %v205 = vunpack.c.l.b16 %v70
    %v206 = vunpack.c.l.b16 %v71
    %v207 = vunpack.c.l.b16 %v72
    %v208 = vunpack.c.l.b16 %v73
    %v209 = vunpack.c.l.b16 %v74
    %v210 = vunpack.c.l.b16 %v75
    %v211 = vunpack.c.l.b16 %v76
    %v212 = vunpack.c.l.b16 %v77
    %v213 = vunpack.c.l.b16 %v78
    %v214 = vpack.c.b16 %v165, %v164
    %v215 = vpack.c.b16 %v167, %v166
    %v216 = vpack.c.b16 %v169, %v168
    %v217 = vpack.c.b16 %v171, %v170
    %v218 = vpack.c.b16 %v173, %v172
    %v219 = vpack.c.b16 %v175, %v174
    %v220 = vpack.c.b16 %v177, %v176
    %v221 = vpack.c.b16 %v179, %v178
    %v222 = vpack.c.b16 %v181, %v180
    %v223 = vpack.c.b16 %v183, %v182
    %v224 = vpack.c.b16 %v185, %v184
    %v225 = vpack.c.b16 %v187, %v186
    %v226 = vpack.c.b16 %v189, %v188
    %v227 = vpack.c.b16 %v191, %v190
    %v228 = vpack.c.b16 %v193, %v192
    %v229 = vpack.c.b16 %v195, %v194
    %v230 = vpack.c.b16 %v197, %v196
    %v231 = vpack.c.b16 %v199, %v198
    %v232 = vpack.c.b16 %v201, %v200
    %v233 = vpack.c.b16 %v203, %v202
    %v234 = vpack.c.b16 %v205, %v204
    %v235 = vpack.c.b16 %v207, %v206
    %v236 = vpack.c.b16 %v209, %v208
    %v237 = vpack.c.b16 %v211, %v210
    %v238 = vpack.c.b16 %v213, %v212
    %vm264 = vcmask 130048
    %v266 = vsel %vm264, %v110, 0
    %268 = vmatprep.subr.bf16.mxu0 0
    %269 = vmatpush1.bf16.msra.mxu0 %v214
    %270 = vmatprep.subr.bf16.mxu0 0
    %271 = vmatpush1.bf16.msra.mxu0 %v215
    %272 = vmatprep.subr.bf16.mxu0 0
    %273 = vmatpush1.bf16.msra.mxu0 %v216
    %274 = vmatprep.subr.bf16.mxu0 0
    %275 = vmatpush1.bf16.msra.mxu0 %v217
    %276 = vmatprep.subr.bf16.mxu0 0
    %277 = vmatpush1.bf16.msra.mxu0 %v218
    %278 = vmatprep.subr.bf16.mxu0 0
    %279 = vmatpush1.bf16.msra.mxu0 %v219
    %280 = vmatprep.subr.bf16.mxu0 0
    %281 = vmatpush1.bf16.msra.mxu0 %v220
    %282 = vmatprep.subr.bf16.mxu0 0
    %283 = vmatpush1.bf16.msra.mxu0 %v221
    %284 = vmatprep.subr.bf16.mxu0 0
    %285 = vmatpush1.bf16.msra.mxu0 %v222
    %286 = vmatprep.subr.bf16.mxu0 0
    %287 = vmatpush1.bf16.msra.mxu0 %v223
    %288 = vmatprep.subr.bf16.mxu0 0
    %289 = vmatpush1.bf16.msra.mxu0 %v224
    %290 = vmatprep.subr.bf16.mxu0 0
    %291 = vmatpush1.bf16.msra.mxu0 %v225
    %292 = vmatprep.subr.bf16.mxu0 0
    %293 = vmatpush1.bf16.msra.mxu0 %v226
    %294 = vmatprep.subr.bf16.mxu0 0
    %295 = vmatpush1.bf16.msra.mxu0 %v227
    %296 = vmatprep.subr.bf16.mxu0 0
    %297 = vmatpush1.bf16.msra.mxu0 %v228
    %298 = vmatprep.subr.bf16.mxu0 0
    %299 = vmatpush1.bf16.msra.mxu0 %v229
    %300 = vmatprep.mubr.bf16.mxu0 %v108
    %301 = vmatmul.mubr.bf16.gmra.mrb[0].mxu0 %v101
    %v302 = vpop.f32.mrb[0].mxu0
    %v303 = vadd.f32 %v84, %v302
    %v304 = vpop.f32.mrb[0].mxu0
    %v305 = vpop.f32.mrb[0].mxu0
    %v306 = vpop.f32.mrb[0].mxu0
    %307 = vdwg.mxu0
    %308 = vmatprep.subr.bf16.mxu0 0
    %309 = vmatpush1.bf16.msra.mxu0 %v230
    %310 = vmatprep.subr.bf16.mxu0 0
    %311 = vmatpush1.bf16.msra.mxu0 %v231
    %312 = vmatprep.subr.bf16.mxu0 0
    %313 = vmatpush1.bf16.msra.mxu0 %v232
    %314 = vmatprep.subr.bf16.mxu0 0
    %315 = vmatpush1.bf16.msra.mxu0 %v233
    %316 = vmatprep.subr.bf16.mxu0 0
    %317 = vmatpush1.bf16.msra.mxu0 %v234
    %318 = vmatprep.subr.bf16.mxu0 0
    %319 = vmatpush1.bf16.msra.mxu0 %v235
    %320 = vmatprep.subr.bf16.mxu0 0
    %321 = vmatpush1.bf16.msra.mxu0 %v236
    %322 = vmatprep.subr.bf16.mxu0 0
    %323 = vmatpush1.bf16.msra.mxu0 %v237
    %324 = vmatprep.subr.bf16.mxu0 0
    %325 = vmatpush1.bf16.msra.mxu0 %v238
    %326 = vmatprep.subr.bf16.mxu0 0
    %327 = vmatpush1.bf16.msra.mxu0 0
    %328 = vmatprep.subr.bf16.mxu0 0
    %329 = vmatpush1.bf16.msra.mxu0 0
    %330 = vmatprep.subr.bf16.mxu0 0
    %331 = vmatpush1.bf16.msra.mxu0 0
    %332 = vmatprep.subr.bf16.mxu0 0
    %333 = vmatpush1.bf16.msra.mxu0 0
    %334 = vmatprep.subr.bf16.mxu0 0
    %335 = vmatpush1.bf16.msra.mxu0 0
    %336 = vmatprep.subr.bf16.mxu0 0
    %337 = vmatpush1.bf16.msra.mxu0 0
    %338 = vmatprep.subr.bf16.mxu0 0
    %339 = vmatpush1.bf16.msra.mxu0 0
    %340 = vmatprep.mubr.bf16.mxu0 %v266
    %341 = vmatmul.mubr.bf16.gmra.mrb[0].mxu0 %v109
    %v342 = vpop.f32.mrb[0].mxu0
    %v343 = vadd.f32 %v303, %v342
    %v344 = vpop.f32.mrb[0].mxu0
    %v345 = vpop.f32.mrb[0].mxu0
    %v346 = vpop.f32.mrb[0].mxu0
    %347 = vdwg.mxu0
    %v348 = vmax.f32 %v343, 0.0
    %v349 = vpack.c.bf16 %v348, %v348
    %v350 = vld [vmem:[%s3] sm:$0xf]
    %v351 = vld [vmem:[%s3 + $0x4] sm:$0xf]
    %v352 = vld [vmem:[%s3 + $0x8] sm:$0xf]
    %v353 = vld [vmem:[%s3 + $0xc] sm:$0xf]
    %v354 = vld [vmem:[%s3 + $0x10] sm:$0xf]
    %v355 = vld [vmem:[%s3 + $0x14] sm:$0xf]
    %v356 = vld [vmem:[%s3 + $0x18] sm:$0xf]
    %v357 = vld [vmem:[%s3 + $0x1c] sm:$0xf]
    %v358 = vld [vmem:[%s3 + $0x20] sm:$0xf]
    %v359 = vld [vmem:[%s3 + $0x24] sm:$0xf]
    %v360 = vld [vmem:[%s3 + $0x28] sm:$0xf]
    %v361 = vld [vmem:[%s3 + $0x2c] sm:$0xf]
    %v362 = vld [vmem:[%s3 + $0x30] sm:$0xf]
    %v363 = vld [vmem:[%s3 + $0x34] sm:$0xf]
    %v364 = vld [vmem:[%s3 + $0x38] sm:$0xf]
    %v365 = vld [vmem:[%s3 + $0x3c] sm:$0xf]
    %v366 = vld [vmem:[%s4] sm:$0x1]
    %v368 = vlaneseq
    %v369 = vshrl.u32 %v368, 7
    %v370 = vsub.s32 0, %v369
    %v371 = vrot.slane %v366, %v370
    %v389 = vunpack.c.l.b16 %v350
    %v390 = vunpack.c.l.b16 %v351
    %v391 = vunpack.c.l.b16 %v352
    %v392 = vunpack.c.l.b16 %v353
    %v393 = vunpack.c.l.b16 %v354
    %v394 = vunpack.c.l.b16 %v355
    %v395 = vunpack.c.l.b16 %v356
    %v396 = vunpack.c.l.b16 %v357
    %v397 = vunpack.c.l.b16 %v358
    %v398 = vunpack.c.l.b16 %v359
    %v399 = vunpack.c.l.b16 %v360
    %v400 = vunpack.c.l.b16 %v361
    %v401 = vunpack.c.l.b16 %v362
    %v402 = vunpack.c.l.b16 %v363
    %v403 = vunpack.c.l.b16 %v364
    %v404 = vunpack.c.l.b16 %v365
    %v405 = vpack.c.b16 %v390, %v389
    %v406 = vpack.c.b16 %v392, %v391
    %v407 = vpack.c.b16 %v394, %v393
    %v408 = vpack.c.b16 %v396, %v395
    %v409 = vpack.c.b16 %v398, %v397
    %v410 = vpack.c.b16 %v400, %v399
    %v411 = vpack.c.b16 %v402, %v401
    %v412 = vpack.c.b16 %v404, %v403
    %421 = vmatprep.subr.bf16.mxu0 0
    %422 = vmatpush1.bf16.msra.mxu0 %v405
    %423 = vmatprep.subr.bf16.mxu0 0
    %424 = vmatpush1.bf16.msra.mxu0 %v406
    %425 = vmatprep.subr.bf16.mxu0 0
    %426 = vmatpush1.bf16.msra.mxu0 %v407
    %427 = vmatprep.subr.bf16.mxu0 0
    %428 = vmatpush1.bf16.msra.mxu0 %v408
    %429 = vmatprep.subr.bf16.mxu0 0
    %430 = vmatpush1.bf16.msra.mxu0 %v409
    %431 = vmatprep.subr.bf16.mxu0 0
    %432 = vmatpush1.bf16.msra.mxu0 %v410
    %433 = vmatprep.subr.bf16.mxu0 0
    %434 = vmatpush1.bf16.msra.mxu0 %v411
    %435 = vmatprep.subr.bf16.mxu0 0
    %436 = vmatpush1.bf16.msra.mxu0 %v412
    %437 = vmatprep.subr.bf16.mxu0 0
    %438 = vmatpush1.bf16.msra.mxu0 0
    %439 = vmatprep.subr.bf16.mxu0 0
    %440 = vmatpush1.bf16.msra.mxu0 0
    %441 = vmatprep.subr.bf16.mxu0 0
    %442 = vmatpush1.bf16.msra.mxu0 0
    %443 = vmatprep.subr.bf16.mxu0 0
    %444 = vmatpush1.bf16.msra.mxu0 0
    %445 = vmatprep.subr.bf16.mxu0 0
    %446 = vmatpush1.bf16.msra.mxu0 0
    %447 = vmatprep.subr.bf16.mxu0 0
    %448 = vmatpush1.bf16.msra.mxu0 0
    %449 = vmatprep.subr.bf16.mxu0 0
    %450 = vmatpush1.bf16.msra.mxu0 0
    %451 = vmatprep.subr.bf16.mxu0 0
    %452 = vmatpush1.bf16.msra.mxu0 0
    %453 = vmatprep.mubr.bf16.mxu0 0
    %454 = vmatmul.mubr.bf16.gmra.mrb[0].mxu0 %v349
    %v455 = vpop.f32.mrb[0].mxu0
    %v456 = vadd.f32 %v371, %v455
    %v457 = vpop.f32.mrb[0].mxu0
    %v458 = vpop.f32.mrb[0].mxu0
    %v459 = vpop.f32.mrb[0].mxu0
    %460 = vdwg.mxu0
    %v461 = vmax.f32 %v456, 0.0
    %v462 = vpack.c.bf16 %v461, %v461
    %v463 = vld [vmem:[%s5] sm:$0xf]
    %v464 = vld [vmem:[%s5 + $0x4] sm:$0xf]
    %v465 = vld [vmem:[%s5 + $0x8] sm:$0xf]
    %v466 = vld [vmem:[%s5 + $0xc] sm:$0xf]
    %v467 = vld [vmem:[%s5 + $0x10] sm:$0xf]
    %v468 = vld [vmem:[%s5 + $0x14] sm:$0xf]
    %v469 = vld [vmem:[%s5 + $0x18] sm:$0xf]
    %v470 = vld [vmem:[%s5 + $0x1c] sm:$0xf]
    %v471 = vld [vmem:[%s5 + $0x20] sm:$0xf]
    %v472 = vld [vmem:[%s5 + $0x24] sm:$0xf]
    %v473 = vld [vmem:[%s5 + $0x28] sm:$0xf]
    %v474 = vld [vmem:[%s5 + $0x2c] sm:$0xf]
    %v475 = vld [vmem:[%s5 + $0x30] sm:$0xf]
    %v476 = vld [vmem:[%s5 + $0x34] sm:$0xf]
    %v477 = vld [vmem:[%s5 + $0x38] sm:$0xf]
    %v478 = vld [vmem:[%s5 + $0x3c] sm:$0xf]
    %v479 = vld [vmem:[%s6] sm:$0x1]
    %v481 = vlaneseq
    %v482 = vshrl.u32 %v481, 7
    %v483 = vsub.s32 0, %v482
    %v484 = vrot.slane %v479, %v483
    %v502 = vunpack.c.l.b16 %v463
    %v503 = vunpack.c.l.b16 %v464
    %v504 = vunpack.c.l.b16 %v465
    %v505 = vunpack.c.l.b16 %v466
    %v506 = vunpack.c.l.b16 %v467
    %v507 = vunpack.c.l.b16 %v468
    %v508 = vunpack.c.l.b16 %v469
    %v509 = vunpack.c.l.b16 %v470
    %v510 = vunpack.c.l.b16 %v471
    %v511 = vunpack.c.l.b16 %v472
    %v512 = vunpack.c.l.b16 %v473
    %v513 = vunpack.c.l.b16 %v474
    %v514 = vunpack.c.l.b16 %v475
    %v515 = vunpack.c.l.b16 %v476
    %v516 = vunpack.c.l.b16 %v477
    %v517 = vunpack.c.l.b16 %v478
    %v518 = vpack.c.b16 %v503, %v502
    %v519 = vpack.c.b16 %v505, %v504
    %v520 = vpack.c.b16 %v507, %v506
    %v521 = vpack.c.b16 %v509, %v508
    %v522 = vpack.c.b16 %v511, %v510
    %v523 = vpack.c.b16 %v513, %v512
    %v524 = vpack.c.b16 %v515, %v514
    %v525 = vpack.c.b16 %v517, %v516
    %534 = vmatprep.subr.bf16.mxu0 0
    %535 = vmatpush1.bf16.msra.mxu0 %v518
    %536 = vmatprep.subr.bf16.mxu0 0
    %537 = vmatpush1.bf16.msra.mxu0 %v519
    %538 = vmatprep.subr.bf16.mxu0 0
    %539 = vmatpush1.bf16.msra.mxu0 %v520
    %540 = vmatprep.subr.bf16.mxu0 0
    %541 = vmatpush1.bf16.msra.mxu0 %v521
    %542 = vmatprep.subr.bf16.mxu0 0
    %543 = vmatpush1.bf16.msra.mxu0 %v522
    %544 = vmatprep.subr.bf16.mxu0 0
    %545 = vmatpush1.bf16.msra.mxu0 %v523
    %546 = vmatprep.subr.bf16.mxu0 0
    %547 = vmatpush1.bf16.msra.mxu0 %v524
    %548 = vmatprep.subr.bf16.mxu0 0
    %549 = vmatpush1.bf16.msra.mxu0 %v525
    %550 = vmatprep.subr.bf16.mxu0 0
    %551 = vmatpush1.bf16.msra.mxu0 0
    %552 = vmatprep.subr.bf16.mxu0 0
    %553 = vmatpush1.bf16.msra.mxu0 0
    %554 = vmatprep.subr.bf16.mxu0 0
    %555 = vmatpush1.bf16.msra.mxu0 0
    %556 = vmatprep.subr.bf16.mxu0 0
    %557 = vmatpush1.bf16.msra.mxu0 0
    %558 = vmatprep.subr.bf16.mxu0 0
    %559 = vmatpush1.bf16.msra.mxu0 0
    %560 = vmatprep.subr.bf16.mxu0 0
    %561 = vmatpush1.bf16.msra.mxu0 0
    %562 = vmatprep.subr.bf16.mxu0 0
    %563 = vmatpush1.bf16.msra.mxu0 0
    %564 = vmatprep.subr.bf16.mxu0 0
    %565 = vmatpush1.bf16.msra.mxu0 0
    %566 = vmatprep.mubr.bf16.mxu0 0
    %567 = vmatmul.mubr.bf16.gmra.mrb[0].mxu0 %v462
    %v568 = vpop.f32.mrb[0].mxu0
    %v569 = vadd.f32 %v484, %v568
    %v570 = vpop.f32.mrb[0].mxu0
    %v571 = vpop.f32.mrb[0].mxu0
    %v572 = vpop.f32.mrb[0].mxu0
    %573 = vdwg.mxu0
    %574 = vst [vmem:[#allocation2] sm:$0x3] %v569
    // Predicated region
    $region30: #{lenet_forward.5} parent=1 // pred_check
      _
    $region31: #{lenet_forward.5} parent=1 // pred_check_branch
      %576 = sbr.rel (0) target = $region33
    $region32: #{lenet_forward.5} parent=1 // pred_region
      %s578 = ssub.s32 32, 32
      %579 = vsyncadd [#allocation3], %s578
      %s581 = sshll.u32 [#allocation2], 4
      %s582 = int_to_ptr.vmem [resolvable:$true] %s581
      %584 = dma.vmem_to_hbm [thread:$0]  %s582, 32, %s7, [#allocation3]
    $region33: #{lenet_forward.5} parent=1 // pred_fallthru
      _
    // Predicated region
    $region34: #{lenet_forward.5} parent=1 // pred_check
      _
    $region35: #{lenet_forward.5} parent=1 // pred_check_branch
      %586 = sbr.rel (0) target = $region37
    $region36: #{lenet_forward.5} parent=1 // pred_region
      %587 = dma.done [#allocation3], 32
    $region37: #{lenet_forward.5} parent=1 // pred_fallthru
      _
    %588 = vsyncpa [#allocation3], 1

</llo_original>
